<compile_context>
chip_gen: v7x
topology: tpu7x:2x2x1
jax: 0.10.0
libtpu: 0.0.40
codegen_flags: <defaults>
</compile_context>

<pallas_src>
import functools

import jax
import jax.numpy as jnp
from jax import lax
from jax.experimental import pallas as pl
from jax.experimental.pallas import tpu as pltpu

NEG_SLOPE = 0.2
THRESHOLD = 0.0
NEG_INF = -1e30                       # finite + bf16-representable mask bias
_FALLBACK_VMEM_LIMIT = 48 * 1024 * 1024


def _pick_vmem_limit():
    """Per-generation scoped-VMEM budget: ~3/4 of physical, capped at 100 MiB.
    v5e/v6e (128 MiB) -> 96 MiB; v7x (64 MiB) -> 48 MiB; unknown -> 48 MiB."""
    try:
        cap = getattr(pltpu.get_tpu_info(), "vmem_capacity_bytes", None)
    except Exception:
        cap = None
    if not cap:
        return _FALLBACK_VMEM_LIMIT
    return int(min(100 * 1024 * 1024, (int(cap) * 3) // 4))


def _default_exp_dtype():
    """bf16 EUP exists on v6e/v7x (~2x transcendental rate); v5e lacks it -> f32."""
    try:
        name = str(pltpu.get_tpu_info()).lower()
    except Exception:
        name = ""
    return jnp.float32 if "v5" in name else jnp.bfloat16


def _attn_vmem_bytes(n, td, hd, num_heads, out_bytes):
    """Conservative per-step VMEM estimate for the attention kernel (x2 for buffering)."""
    resident = n * hd * 2 + num_heads * n * 4                         # ft bf16 + elT f32
    per_step = td * n * 1 + td * num_heads * 4 + td * hd * out_bytes  # adjT i8 + er + out
    return 2 * (resident + per_step)


def node_mlp_kernel(feat_ref, w_h1_ref, w_fc2_ref, a_lT_ref, a_r_ref,
                    ft_ref, elT_ref, er_ref, *, num_heads, out_feats):
    feat = feat_ref[...]                                        # (TN, Din) f32
    hd = num_heads * out_feats

    # node split: "rear" vs "other" (feat.mean(dim=1) > threshold)
    rear = jnp.mean(feat, axis=1, keepdims=True) > THRESHOLD    # (TN, 1) bool

    # shared h1 (first_layer path) + fused [fc | fc_rear] matmul.  bf16 MXU, f32 acc.
    h1 = jnp.dot(feat.astype(jnp.bfloat16), w_h1_ref[...],
                 preferred_element_type=jnp.float32)
    h1 = jnp.maximum(h1, 0.0)                                   # activation = ReLU
    both = jnp.dot(h1.astype(jnp.bfloat16), w_fc2_ref[...],
                   preferred_element_type=jnp.float32)          # (TN, 2*HD)
    both = jnp.maximum(both, 0.0)
    ft = jnp.where(rear, both[:, hd:2 * hd], both[:, :hd])      # (TN, HD) f32
    ft_bf = ft.astype(jnp.bfloat16)
    ft_ref[...] = ft_bf                                         # lane-dense bf16 store

    # attention logits on the (otherwise idle) MXU instead of 2H cross-lane reductions.
    #   elT[h, n] = sum_d ft[n, h*D+d] * attn_l[h, d]  -> (Hpad, TN); lane-dense along N.
    elT = lax.dot_general(a_lT_ref[...], ft_bf, (((1,), (1,)), ((), ())),
                          preferred_element_type=jnp.float32)   # contract HD on both
    elT_ref[...] = elT[:num_heads, :]                           # (H, TN)
    er_ref[...] = jnp.dot(ft_bf, a_r_ref[...],
                          preferred_element_type=jnp.float32)   # (TN, H), tiny


def attention_kernel(adjT_ref, ft_ref, elT_ref, er_ref, out_ref,
                     *, num_heads, out_feats, exp_dtype):
    # adjT (int8) is only a 0/1 mask: build the additive softmax bias ONCE per tile.
    bias = jnp.where(adjT_ref[...] == 0,
                     jnp.float32(NEG_INF), jnp.float32(0.0))    # (TD, Nsrc) f32
    ft = ft_ref[...]                                            # (Nsrc, HD) bf16, resident
    er = er_ref[...]                                            # (TD, H) f32

    outs = []
    for h in range(num_heads):                                  # static, small H
        sl = slice(h * out_feats, (h + 1) * out_feats)
        el_row = elT_ref[h:h + 1, :]                            # (1, Nsrc) f32, lane-dense
        er_col = er[:, h:h + 1]                                 # (TD, 1) f32
        s = er_col + el_row                                     # VPU broadcast add
        s = jnp.where(s > 0, s, NEG_SLOPE * s)                  # leaky_relu
        s = s + bias                                            # mask non-edges (1 add/head)
        m = jnp.max(s, axis=1, keepdims=True)                   # finite: >=1 edge per dst row
        p = jnp.exp((s - m).astype(exp_dtype))                  # bf16 EUP on v6e/v7x
        denom = jnp.sum(p.astype(jnp.float32), axis=1, keepdims=True)
        agg = jnp.dot(p.astype(jnp.bfloat16), ft[:, sl],        # bf16 MXU, f32 acc
                      preferred_element_type=jnp.float32)       # (TD, D)
        agg = agg * pl.reciprocal(denom, approx=True)           # normalize post-aggregation
        outs.append(jnp.maximum(agg, 0.0))                      # final activation (ReLU)
    out_ref[...] = jnp.concatenate(outs, axis=1).astype(out_ref.dtype)  # lane-dense store


def snat_conv(feat, adjT, w_h1, w_fc, w_fcr, attn_l, attn_r, *,
              num_heads, out_feats, node_tile=256, dst_tile=256,
              exp_dtype=None, out_dtype=jnp.float32):
    n, din = feat.shape
    t = w_h1.shape[1]
    hd = num_heads * out_feats
    if exp_dtype is None:
        exp_dtype = _default_exp_dtype()
    vmem_limit = _pick_vmem_limit()
    out_bytes = jnp.dtype(out_dtype).itemsize

    # ---- tile selection (per-generation VMEM budget; keep >=2 tiles for v7x megacore)
    tn = min(node_tile, n)
    assert n % tn == 0, "N must be divisible by node_tile"
    if n // tn < 2 and (n // 2) % 128 == 0:
        tn = n // 2
    assert tn == n or tn % 128 == 0, "node tile must be a multiple of 128 (el_T lanes)"

    td = min(dst_tile, n)
    assert n % td == 0, "N must be divisible by dst_tile"
    while (td % 2 == 0 and (td // 2) % 32 == 0 and td > 64 and
           _attn_vmem_bytes(n, td, hd, num_heads, out_bytes) > (vmem_limit * 3) // 5):
        td //= 2
    if n // td < 2 and (n // 2) % 32 == 0:
        td = n // 2
    assert td == n or td % 32 == 0, "dst tile must be a multiple of 32 (int8 sublanes)"

    # ---- wrapper-side one-time layout plumbing (tiny XLA ops; no N^2 casts)
    if adjT.dtype != jnp.int8:
        adjT = (adjT != 0).astype(jnp.int8)                     # mask-only adjacency
    w_h1_bf = w_h1.astype(jnp.bfloat16)
    w_fc2_bf = jnp.concatenate([w_fc, w_fcr], axis=1).astype(jnp.bfloat16)   # (T, 2HD)
    # block-diagonal attention matrices so el/er become MXU matmuls in the node kernel
    eye = jnp.eye(num_heads, dtype=jnp.float32)
    al = attn_l.reshape(num_heads, out_feats)
    ar = attn_r.reshape(num_heads, out_feats)
    a_l_bd = (al[:, :, None] * eye[:, None, :]).reshape(hd, num_heads)       # (HD, H)
    a_r_bd = (ar[:, :, None] * eye[:, None, :]).reshape(hd, num_heads)       # (HD, H)
    h_pad = max(8, ((num_heads + 7) // 8) * 8)                  # pad MXU M-dim to sublanes
    a_lT = jnp.zeros((h_pad, hd), jnp.bfloat16).at[:num_heads].set(
        a_l_bd.T.astype(jnp.bfloat16))                                       # (Hpad, HD)
    a_r_bf = a_r_bd.astype(jnp.bfloat16)

    node_kernel = functools.partial(node_mlp_kernel,
                                    num_heads=num_heads, out_feats=out_feats)
    ft_bf, el_T, er = pl.pallas_call(
        node_kernel,
        out_shape=(jax.ShapeDtypeStruct((n, hd), jnp.bfloat16),
                   jax.ShapeDtypeStruct((num_heads, n), jnp.float32),
                   jax.ShapeDtypeStruct((n, num_heads), jnp.float32)),
        grid=(n // tn,),
        in_specs=[
            pl.BlockSpec((tn, din), lambda i: (i, 0)),          # feat tile
            pl.BlockSpec((din, t), lambda i: (0, 0)),           # W_h1 (bf16)
            pl.BlockSpec((t, 2 * hd), lambda i: (0, 0)),        # [W_fc | W_fc_rear]
            pl.BlockSpec((h_pad, hd), lambda i: (0, 0)),        # attn_l block-diag^T
            pl.BlockSpec((hd, num_heads), lambda i: (0, 0)),    # attn_r block-diag
        ],
        out_specs=(pl.BlockSpec((tn, hd), lambda i: (i, 0)),            # ft
                   pl.BlockSpec((num_heads, tn), lambda i: (0, i)),     # el_T (lane-dense)
                   pl.BlockSpec((tn, num_heads), lambda i: (i, 0))),    # er (tiny)
        compiler_params=pltpu.CompilerParams(
            dimension_semantics=("parallel",),
            vmem_limit_bytes=vmem_limit),
    )(feat, w_h1_bf, w_fc2_bf, a_lT, a_r_bf)

    attn_kernel = functools.partial(attention_kernel, num_heads=num_heads,
                                    out_feats=out_feats, exp_dtype=exp_dtype)
    out = pl.pallas_call(
        attn_kernel,
        out_shape=jax.ShapeDtypeStruct((n, hd), out_dtype),
        grid=(n // td,),
        in_specs=[
            pl.BlockSpec((td, n), lambda i: (i, 0)),            # adjT dst-row tile (int8, streamed)
            pl.BlockSpec((n, hd), lambda i: (0, 0)),            # ft, resident across grid
            pl.BlockSpec((num_heads, n), lambda i: (0, 0)),     # el_T, resident
            pl.BlockSpec((td, num_heads), lambda i: (i, 0)),    # er tile
        ],
        out_specs=pl.BlockSpec((td, hd), lambda i: (i, 0)),
        compiler_params=pltpu.CompilerParams(
            dimension_semantics=("parallel",),                  # dst tiles independent (v7x 2 TCs)
            vmem_limit_bytes=vmem_limit),
    )(adjT, ft_bf, el_T, er)

    rst = out.astype(jnp.float32).reshape(n, num_heads, out_feats)
    index_rear = jnp.broadcast_to(
        feat.mean(axis=1, keepdims=True) > THRESHOLD, (n, din))
    index_other = jnp.logical_not(index_rear)
    return rst, index_rear, index_other


def _xavier_normal(key, shape, gain):
    fan_in, fan_out = shape[0], shape[1]
    std = gain * (2.0 / (fan_in + fan_out)) ** 0.5
    return std * jax.random.normal(key, shape, jnp.float32)


if __name__ == "__main__":
    # Small shapes consistent with the module: N nodes, D_in feats, T hidden, H heads, D_out.
    N, D_IN, T_HID, H, D_OUT = 512, 32, 32, 4, 32
    gain = 2.0 ** 0.5  # nn.init.calculate_gain('relu')

    key = jax.random.PRNGKey(0)
    k_feat, k_adj, k1, k2, k3, k4, k5 = jax.random.split(key, 7)

    feat = jax.random.normal(k_feat, (N, D_IN), jnp.float32)

    # int8 transposed adjacency adjT[dst, src] with self-loops (hard precondition)
    adj = jax.random.uniform(k_adj, (N, N)) < 0.05                        # adj[src, dst]
    adjT = jnp.logical_or(adj.T, jnp.eye(N, dtype=bool)).astype(jnp.int8)

    # parameters (stored transposed relative to torch Linear.weight so we right-multiply)
    w_h1 = _xavier_normal(k1, (D_IN, T_HID), gain)        # h1.weight^T
    w_fc = _xavier_normal(k2, (T_HID, H * D_OUT), gain)   # fc.weight^T
    w_fcr = _xavier_normal(k3, (T_HID, H * D_OUT), gain)  # fc_rear.weight^T
    attn_l = _xavier_normal(k4, (1, H * D_OUT), gain)     # (1, H, D_out) flattened
    attn_r = _xavier_normal(k5, (1, H * D_OUT), gain)

    rst, index_rear, index_other = snat_conv(
        feat, adjT, w_h1, w_fc, w_fcr, attn_l, attn_r,
        num_heads=H, out_feats=D_OUT)
    jax.block_until_ready((rst, index_rear, index_other))

    assert rst.shape == (N, H, D_OUT)
    assert index_rear.shape == (N, D_IN) and index_other.shape == (N, D_IN)
    assert bool(jnp.all(jnp.isfinite(rst)))
    print("KERNEL_OK")
</pallas_src>

<mosaic_0001>
module attributes {stable_mosaic.version = 11 : i64} {
  func.func @node_mlp_kernel(%arg0: i32, %arg1: memref<256x32xf32, #tpu.memory_space<vmem>>, %arg2: memref<32x32xbf16, #tpu.memory_space<vmem>>, %arg3: memref<32x256xbf16, #tpu.memory_space<vmem>>, %arg4: memref<8x128xbf16, #tpu.memory_space<vmem>>, %arg5: memref<128x4xbf16, #tpu.memory_space<vmem>>, %arg6: memref<256x128xbf16, #tpu.memory_space<vmem>>, %arg7: memref<4x256xf32, #tpu.memory_space<vmem>>, %arg8: memref<256x4xf32, #tpu.memory_space<vmem>>) attributes {dimension_semantics = [#tpu.dimension_semantics<parallel>], iteration_bounds = array<i64: 2>, scalar_prefetch = 0 : i64, scratch_operands = 0 : i64, tpu.core_type = #tpu.core_type<tc>, window_params = [{transform_indices = @transform_0, window_bounds = array<i64: 256, 32>}, {pipeline_mode = #tpu.pipeline_mode<synchronous>, transform_indices = @transform_1, window_bounds = array<i64: 32, 32>}, {pipeline_mode = #tpu.pipeline_mode<synchronous>, transform_indices = @transform_2, window_bounds = array<i64: 32, 256>}, {pipeline_mode = #tpu.pipeline_mode<synchronous>, transform_indices = @transform_3, window_bounds = array<i64: 8, 128>}, {pipeline_mode = #tpu.pipeline_mode<synchronous>, transform_indices = @transform_4, window_bounds = array<i64: 128, 4>}, {transform_indices = @transform_5, window_bounds = array<i64: 256, 128>}, {transform_indices = @transform_6, window_bounds = array<i64: 4, 256>}, {transform_indices = @transform_7, window_bounds = array<i64: 256, 4>}]} {
    %c0 = arith.constant 0 : index
    %c0_0 = arith.constant 0 : index
    %0 = vector.load %arg1[%c0, %c0_0] : memref<256x32xf32, #tpu.memory_space<vmem>>, vector<256x32xf32>
    %cst = arith.constant dense<0.000000e+00> : vector<256xf32>
    %1 = vector.multi_reduction <add>, %0, %cst [1] : vector<256x32xf32> to vector<256xf32>
    %2 = vector.shape_cast %1 : vector<256xf32> to vector<256x1xf32>
    %cst_1 = arith.constant 3.200000e+01 : f32
    %3 = vector.broadcast %cst_1 : f32 to vector<256x1xf32>
    %4 = arith.divf %2, %3 : vector<256x1xf32>
    %cst_2 = arith.constant 0.000000e+00 : f32
    %5 = vector.broadcast %cst_2 : f32 to vector<256x1xf32>
    %6 = arith.cmpf ogt, %4, %5 : vector<256x1xf32>
    %7 = arith.truncf %0 : vector<256x32xf32> to vector<256x32xbf16>
    %c0_3 = arith.constant 0 : index
    %c0_4 = arith.constant 0 : index
    %8 = vector.load %arg2[%c0_3, %c0_4] : memref<32x32xbf16, #tpu.memory_space<vmem>>, vector<32x32xbf16>
    %cst_5 = arith.constant dense<0.000000e+00> : vector<256x32xf32>
    %9 = tpu.matmul %7, %8, %cst_5 {dimension_numbers = #tpu.dot_dimension_numbers<[1], [0], [0], [1], [0, 0, 1, 1], [], []>} : vector<256x32xbf16>, vector<32x32xbf16>, vector<256x32xf32> -> vector<256x32xf32>
    %cst_6 = arith.constant 0.000000e+00 : f32
    %10 = vector.broadcast %cst_6 : f32 to vector<256x32xf32>
    %11 = arith.maximumf %9, %10 : vector<256x32xf32>
    %12 = arith.truncf %11 : vector<256x32xf32> to vector<256x32xbf16>
    %c0_7 = arith.constant 0 : index
    %c0_8 = arith.constant 0 : index
    %13 = vector.load %arg3[%c0_7, %c0_8] : memref<32x256xbf16, #tpu.memory_space<vmem>>, vector<32x256xbf16>
    %cst_9 = arith.constant dense<0.000000e+00> : vector<256x256xf32>
    %14 = tpu.matmul %12, %13, %cst_9 {dimension_numbers = #tpu.dot_dimension_numbers<[1], [0], [0], [1], [0, 0, 1, 1], [], []>} : vector<256x32xbf16>, vector<32x256xbf16>, vector<256x256xf32> -> vector<256x256xf32>
    %cst_10 = arith.constant 0.000000e+00 : f32
    %15 = vector.broadcast %cst_10 : f32 to vector<256x256xf32>
    %16 = arith.maximumf %14, %15 : vector<256x256xf32>
    %17 = vector.extract_strided_slice %16 {offsets = [0, 128], sizes = [256, 128], strides = [1, 1]} : vector<256x256xf32> to vector<256x128xf32>
    %18 = vector.extract_strided_slice %16 {offsets = [0, 0], sizes = [256, 128], strides = [1, 1]} : vector<256x256xf32> to vector<256x128xf32>
    %19 = vector.shape_cast %6 : vector<256x1xi1> to vector<256x1xi1>
    %20 = vector.broadcast %19 : vector<256x1xi1> to vector<256x128xi1>
    %21 = arith.select %20, %17, %18 : vector<256x128xi1>, vector<256x128xf32>
    %22 = arith.truncf %21 : vector<256x128xf32> to vector<256x128xbf16>
    %c0_11 = arith.constant 0 : index
    %c0_12 = arith.constant 0 : index
    %23 = vector.load %arg6[%c0_11, %c0_12] : memref<256x128xbf16, #tpu.memory_space<vmem>>, vector<256x128xbf16>
    tpu.vector_store %arg6[%c0_11, %c0_12], %22 {strides = array<i32>} : memref<256x128xbf16, #tpu.memory_space<vmem>>, vector<256x128xbf16>,
    %c0_13 = arith.constant 0 : index
    %c0_14 = arith.constant 0 : index
    %24 = vector.load %arg4[%c0_13, %c0_14] : memref<8x128xbf16, #tpu.memory_space<vmem>>, vector<8x128xbf16>
    %cst_15 = arith.constant dense<0.000000e+00> : vector<8x256xf32>
    %25 = tpu.matmul %24, %22, %cst_15 {dimension_numbers = #tpu.dot_dimension_numbers<[1], [1], [0], [0], [0, 0, 1, 0], [], []>} : vector<8x128xbf16>, vector<256x128xbf16>, vector<8x256xf32> -> vector<8x256xf32>
    %26 = vector.extract_strided_slice %25 {offsets = [0, 0], sizes = [4, 256], strides = [1, 1]} : vector<8x256xf32> to vector<4x256xf32>
    %c0_16 = arith.constant 0 : index
    %c0_17 = arith.constant 0 : index
    %27 = vector.load %arg7[%c0_16, %c0_17] : memref<4x256xf32, #tpu.memory_space<vmem>>, vector<4x256xf32>
    tpu.vector_store %arg7[%c0_16, %c0_17], %26 {strides = array<i32>} : memref<4x256xf32, #tpu.memory_space<vmem>>, vector<4x256xf32>,
    %c0_18 = arith.constant 0 : index
    %c0_19 = arith.constant 0 : index
    %28 = vector.load %arg5[%c0_18, %c0_19] : memref<128x4xbf16, #tpu.memory_space<vmem>>, vector<128x4xbf16>
    %cst_20 = arith.constant dense<0.000000e+00> : vector<256x4xf32>
    %29 = tpu.matmul %22, %28, %cst_20 {dimension_numbers = #tpu.dot_dimension_numbers<[1], [0], [0], [1], [0, 0, 1, 1], [], []>} : vector<256x128xbf16>, vector<128x4xbf16>, vector<256x4xf32> -> vector<256x4xf32>
    %c0_21 = arith.constant 0 : index
    %c0_22 = arith.constant 0 : index
    %30 = vector.load %arg8[%c0_21, %c0_22] : memref<256x4xf32, #tpu.memory_space<vmem>>, vector<256x4xf32>
    tpu.vector_store %arg8[%c0_21, %c0_22], %29 {strides = array<i32>} : memref<256x4xf32, #tpu.memory_space<vmem>>, vector<256x4xf32>,
    return
  }
  func.func @transform_0(%arg0: i32) -> (i32, i32) {
    %c0_i32 = arith.constant 0 : i32
    %c0_i32_0 = arith.constant 0 : i32
    return %arg0, %c0_i32 : i32, i32
  }
  func.func @transform_1(%arg0: i32) -> (i32, i32) {
    %c0_i32 = arith.constant 0 : i32
    %c0_i32_0 = arith.constant 0 : i32
    %c0_i32_1 = arith.constant 0 : i32
    return %c0_i32, %c0_i32_0 : i32, i32
  }
  func.func @transform_2(%arg0: i32) -> (i32, i32) {
    %c0_i32 = arith.constant 0 : i32
    %c0_i32_0 = arith.constant 0 : i32
    %c0_i32_1 = arith.constant 0 : i32
    return %c0_i32, %c0_i32_0 : i32, i32
  }
  func.func @transform_3(%arg0: i32) -> (i32, i32) {
    %c0_i32 = arith.constant 0 : i32
    %c0_i32_0 = arith.constant 0 : i32
    %c0_i32_1 = arith.constant 0 : i32
    return %c0_i32, %c0_i32_0 : i32, i32
  }
  func.func @transform_4(%arg0: i32) -> (i32, i32) {
    %c0_i32 = arith.constant 0 : i32
    %c0_i32_0 = arith.constant 0 : i32
    %c0_i32_1 = arith.constant 0 : i32
    return %c0_i32, %c0_i32_0 : i32, i32
  }
  func.func @transform_5(%arg0: i32) -> (i32, i32) {
    %c0_i32 = arith.constant 0 : i32
    %c0_i32_0 = arith.constant 0 : i32
    return %arg0, %c0_i32 : i32, i32
  }
  func.func @transform_6(%arg0: i32) -> (i32, i32) {
    %c0_i32 = arith.constant 0 : i32
    %c0_i32_0 = arith.constant 0 : i32
    return %c0_i32, %arg0 : i32, i32
  }
  func.func @transform_7(%arg0: i32) -> (i32, i32) {
    %c0_i32 = arith.constant 0 : i32
    %c0_i32_0 = arith.constant 0 : i32
    return %arg0, %c0_i32 : i32, i32
  }
}

</mosaic_0001>

<llo_original>
// kernel: tpu_custom_call.1
$region0: #{tpu_custom_call.1}
  #allocation0 [shape = 'u32[]', space=smem, size = 0x4, offset = 0x4, fixed_abs, tag = 'smem constant byte address 0x4 - core index']
  #allocation1 [shape = 'u32[144,128]{1,0:T(1,128)}', space=vmem, size = 0x12000, scoped, tag = 'internal scratch']
  %s0 = inlined_call_operand.vmem [shape: f32[512,32], index: 0, kind: input, shape index: {}]
  %s1 = inlined_call_operand.vmem [shape: bf16[32,32], index: 1, kind: input, shape index: {}]
  %s2 = inlined_call_operand.vmem [shape: bf16[32,256], index: 2, kind: input, shape index: {}]
  %s3 = inlined_call_operand.vmem [shape: bf16[8,128], index: 3, kind: input, shape index: {}]
  %s4 = inlined_call_operand.vmem [shape: bf16[128,4], index: 4, kind: input, shape index: {}]
  %s5 = inlined_call_operand.hbm [shape: bf16[512,128], index: 5, kind: output, shape index: {0}]
  %s6 = inlined_call_operand.hbm [shape: f32[4,512], index: 6, kind: output, shape index: {1}]
  %s7 = inlined_call_operand.vmem [shape: f32[512,4], index: 7, kind: output, shape index: {2}]
  %8 = xla_tuple %s5, %s6, %s7
  %s9 = sld [smem:[#allocation0]]
  $region69: #{tpu_custom_call.1} parent=0
    _
  %s11 = ssub.s32 1, %s9
  %s12 = scalar_select 0, %s11, %s9
  $region1: #{tpu_custom_call.1} parent=0
    #allocation2 [shape = 'u8[131072]{0}', space=vmem, size = 0x20000, scoped, tag = 'output window, operand 0']
    #allocation3 [shape = 's32[2]{0}', space=sflag, size = 0x8, scoped, tag = 'scoped memory for tpu_custom_call.1']
    #allocation4 [shape = 'u8[8192]{0}', space=vmem, size = 0x2000, scoped, tag = 'output window, operand 1']
    #allocation5 [shape = 's32[2]{0}', space=sflag, size = 0x8, scoped, tag = 'scoped memory for tpu_custom_call.1']
    %13 = vsyncpa [#allocation3], 0
    %s14 = scalar_lea.sflag [#allocation3], 1
    %15 = vsyncpa %s14, 0
    %16 = vsyncpa [#allocation5], 0
    %s17 = scalar_lea.sflag [#allocation5], 1
    %18 = vsyncpa %s17, 0
    loop: start=0, step=1, limit=4
    $region2: #{tpu_custom_call.1} parent=1 // loop_pre_header
      _
    $region3: #{tpu_custom_call.1} parent=1 // loop_header
      %s20 = sphi 0, %s24
      %p21 = scmp.ge.s32.totalorder %s20, 4
      %s30 = sphi 0, %s32
      %s33 = sphi 0, %s30
      %s34 = sphi 0, %s33
      %s50 = sphi 0, %s34
      %s54 = sphi 0, %s54
      %s56 = sphi 0, %s54
      %s57 = sphi 0, %s56
      %s71 = sphi 0, %s57
      %s75 = sphi 0, %s75
      %s77 = sphi 0, %s75
      %s78 = sphi 0, %s77
      %s92 = sphi 0, %s78
      %s96 = sphi 0, %s96
      %s98 = sphi 0, %s96
      %s99 = sphi 0, %s98
      %s113 = sphi 0, %s99
      %s117 = sphi 0, %s117
      %s119 = sphi 0, %s117
      %s120 = sphi 0, %s119
      %s134 = sphi 0, %s120
      %s140 = sphi 0, %s142
      %s143 = sphi 0, %s140
      %s144 = sphi 0, %s143
      %s160 = sphi 0, %s144
      %s166 = sphi 0, %s168
      %s169 = sphi 0, %s166
      %s170 = sphi 0, %s169
      %s186 = sphi 0, %s170
      %s192 = sphi 0, %s194
      %s195 = sphi 0, %s192
      %s196 = sphi 0, %s195
      %s212 = sphi 0, %s196
    $region4: #{tpu_custom_call.1} parent=1 // loop_header_branch
      %23 = sbr.rel (%p21) target = $region8
    $region5: #{tpu_custom_call.1} parent=1 // loop_body
      %s25 = ssub.s32 %s20, 1
      %s26 = ssub.s32 %s20, 2
      %s27 = sadd.s32 %s20, 1
      %s28 = ssub.s32 %s20, %s27
      %p29 = scmp.eq.s32.totalorder %s28, 0
      %s31 = sadd.s32 %s30, 1
      %s32 = scalar_select %p29, %s30, %s31
      %p35 = pneg %p29
      %p36 = scmp.eq.s32.totalorder %s20, 1
      %p37 = por %p35, %p36
      %p38 = scmp.ne.s32.totalorder %s30, %s33
      %p39 = scmp.eq.s32.totalorder %s20, 0
      %p40 = por %p38, %p39
      %p41 = scmp.ne.s32.totalorder %s30, %s33
      %p42 = scmp.eq.s32.totalorder %s25, 1
      %p43 = por %p41, %p42
      %p44 = scmp.ne.s32.totalorder %s33, %s34
      %p45 = scmp.eq.s32.totalorder %s25, 0
      %p46 = por %p44, %p45
      %p47 = scmp.ne.s32.totalorder %s33, %s34
      %p48 = scmp.eq.s32.totalorder %s26, 1
      %p49 = por %p47, %p48
      %p51 = scmp.ne.s32.totalorder %s34, %s50
      %p52 = scmp.eq.s32.totalorder %s26, 0
      %p53 = por %p51, %p52
      %s55 = sadd.s32 %s54, 1
      %p58 = scmp.eq.s32.totalorder %s20, 1
      %p59 = scmp.ne.s32.totalorder %s54, %s56
      %p60 = scmp.eq.s32.totalorder %s20, 0
      %p61 = por %p59, %p60
      %p62 = scmp.ne.s32.totalorder %s54, %s56
      %p63 = scmp.eq.s32.totalorder %s25, 1
      %p64 = por %p62, %p63
      %p65 = scmp.ne.s32.totalorder %s56, %s57
      %p66 = scmp.eq.s32.totalorder %s25, 0
      %p67 = por %p65, %p66
      %p68 = scmp.ne.s32.totalorder %s56, %s57
      %p69 = scmp.eq.s32.totalorder %s26, 1
      %p70 = por %p68, %p69
      %p72 = scmp.ne.s32.totalorder %s57, %s71
      %p73 = scmp.eq.s32.totalorder %s26, 0
      %p74 = por %p72, %p73
      %s76 = sadd.s32 %s75, 1
      %p79 = scmp.eq.s32.totalorder %s20, 1
      %p80 = scmp.ne.s32.totalorder %s75, %s77
      %p81 = scmp.eq.s32.totalorder %s20, 0
      %p82 = por %p80, %p81
      %p83 = scmp.ne.s32.totalorder %s75, %s77
      %p84 = scmp.eq.s32.totalorder %s25, 1
      %p85 = por %p83, %p84
      %p86 = scmp.ne.s32.totalorder %s77, %s78
      %p87 = scmp.eq.s32.totalorder %s25, 0
      %p88 = por %p86, %p87
      %p89 = scmp.ne.s32.totalorder %s77, %s78
      %p90 = scmp.eq.s32.totalorder %s26, 1
      %p91 = por %p89, %p90
      %p93 = scmp.ne.s32.totalorder %s78, %s92
      %p94 = scmp.eq.s32.totalorder %s26, 0
      %p95 = por %p93, %p94
      %s97 = sadd.s32 %s96, 1
      %p100 = scmp.eq.s32.totalorder %s20, 1
      %p101 = scmp.ne.s32.totalorder %s96, %s98
      %p102 = scmp.eq.s32.totalorder %s20, 0
      %p103 = por %p101, %p102
      %p104 = scmp.ne.s32.totalorder %s96, %s98
      %p105 = scmp.eq.s32.totalorder %s25, 1
      %p106 = por %p104, %p105
      %p107 = scmp.ne.s32.totalorder %s98, %s99
      %p108 = scmp.eq.s32.totalorder %s25, 0
      %p109 = por %p107, %p108
      %p110 = scmp.ne.s32.totalorder %s98, %s99
      %p111 = scmp.eq.s32.totalorder %s26, 1
      %p112 = por %p110, %p111
      %p114 = scmp.ne.s32.totalorder %s99, %s113
      %p115 = scmp.eq.s32.totalorder %s26, 0
      %p116 = por %p114, %p115
      %s118 = sadd.s32 %s117, 1
      %p121 = scmp.eq.s32.totalorder %s20, 1
      %p122 = scmp.ne.s32.totalorder %s117, %s119
      %p123 = scmp.eq.s32.totalorder %s20, 0
      %p124 = por %p122, %p123
      %p125 = scmp.ne.s32.totalorder %s117, %s119
      %p126 = scmp.eq.s32.totalorder %s25, 1
      %p127 = por %p125, %p126
      %p128 = scmp.ne.s32.totalorder %s119, %s120
      %p129 = scmp.eq.s32.totalorder %s25, 0
      %p130 = por %p128, %p129
      %p131 = scmp.ne.s32.totalorder %s119, %s120
      %p132 = scmp.eq.s32.totalorder %s26, 1
      %p133 = por %p131, %p132
      %p135 = scmp.ne.s32.totalorder %s120, %s134
      %p136 = scmp.eq.s32.totalorder %s26, 0
      %p137 = por %p135, %p136
      %s138 = ssub.s32 %s20, %s27
      %p139 = scmp.eq.s32.totalorder %s138, 0
      %s141 = sadd.s32 %s140, 1
      %s142 = scalar_select %p139, %s140, %s141
      %p145 = pneg %p139
      %p146 = scmp.eq.s32.totalorder %s20, 1
      %p147 = por %p145, %p146
      %p148 = scmp.ne.s32.totalorder %s140, %s143
      %p149 = scmp.eq.s32.totalorder %s20, 0
      %p150 = por %p148, %p149
      %p151 = scmp.ne.s32.totalorder %s140, %s143
      %p152 = scmp.eq.s32.totalorder %s25, 1
      %p153 = por %p151, %p152
      %p154 = scmp.ne.s32.totalorder %s143, %s144
      %p155 = scmp.eq.s32.totalorder %s25, 0
      %p156 = por %p154, %p155
      %p157 = scmp.ne.s32.totalorder %s143, %s144
      %p158 = scmp.eq.s32.totalorder %s26, 1
      %p159 = por %p157, %p158
      %p161 = scmp.ne.s32.totalorder %s144, %s160
      %p162 = scmp.eq.s32.totalorder %s26, 0
      %p163 = por %p161, %p162
      %s164 = ssub.s32 %s20, %s27
      %p165 = scmp.eq.s32.totalorder %s164, 0
      %s167 = sadd.s32 %s166, 1
      %s168 = scalar_select %p165, %s166, %s167
      %p171 = pneg %p165
      %p172 = scmp.eq.s32.totalorder %s20, 1
      %p173 = por %p171, %p172
      %p174 = scmp.ne.s32.totalorder %s166, %s169
      %p175 = scmp.eq.s32.totalorder %s20, 0
      %p176 = por %p174, %p175
      %p177 = scmp.ne.s32.totalorder %s166, %s169
      %p178 = scmp.eq.s32.totalorder %s25, 1
      %p179 = por %p177, %p178
      %p180 = scmp.ne.s32.totalorder %s169, %s170
      %p181 = scmp.eq.s32.totalorder %s25, 0
      %p182 = por %p180, %p181
      %p183 = scmp.ne.s32.totalorder %s169, %s170
      %p184 = scmp.eq.s32.totalorder %s26, 1
      %p185 = por %p183, %p184
      %p187 = scmp.ne.s32.totalorder %s170, %s186
      %p188 = scmp.eq.s32.totalorder %s26, 0
      %p189 = por %p187, %p188
      %s190 = ssub.s32 %s20, %s27
      %p191 = scmp.eq.s32.totalorder %s190, 0
      %s193 = sadd.s32 %s192, 1
      %s194 = scalar_select %p191, %s192, %s193
      %p197 = pneg %p191
      %p198 = scmp.eq.s32.totalorder %s20, 1
      %p199 = por %p197, %p198
      %p200 = scmp.ne.s32.totalorder %s192, %s195
      %p201 = scmp.eq.s32.totalorder %s20, 0
      %p202 = por %p200, %p201
      %p203 = scmp.ne.s32.totalorder %s192, %s195
      %p204 = scmp.eq.s32.totalorder %s25, 1
      %p205 = por %p203, %p204
      %p206 = scmp.ne.s32.totalorder %s195, %s196
      %p207 = scmp.eq.s32.totalorder %s25, 0
      %p208 = por %p206, %p207
      %p209 = scmp.ne.s32.totalorder %s195, %s196
      %p210 = scmp.eq.s32.totalorder %s26, 1
      %p211 = por %p209, %p210
      %p213 = scmp.ne.s32.totalorder %s196, %s212
      %p214 = scmp.eq.s32.totalorder %s26, 0
      %p215 = por %p213, %p214
      %p216 = scmp.le.s32.totalorder 1, %s20
      %p217 = scmp.lt.s32.totalorder %s20, 3
      %p218 = pnand %p216, %p217
      %p219 = pneg %p218
      // Predicated region
      $region9: #{tpu_custom_call.1} parent=5 // pred_check
        _
      $region10: #{tpu_custom_call.1} parent=5 // pred_check_branch
        %221 = sbr.rel (%p218) target = $region12
      $region11: #{tpu_custom_call.1} parent=5 // pred_region
        %s222 = ssub.s32 %s20, 1
        // Predicated region
        $region13: #{tpu_custom_call.1} parent=11 // pred_check
          %p223 = pneg %p67
        $region14: #{tpu_custom_call.1} parent=11 // pred_check_branch
          %225 = sbr.rel (%p223) target = $region16
        $region15: #{tpu_custom_call.1} parent=11 // pred_region
          _
        $region16: #{tpu_custom_call.1} parent=11 // pred_fallthru
          _
        // Predicated region
        $region17: #{tpu_custom_call.1} parent=11 // pred_check
          %p226 = pneg %p88
        $region18: #{tpu_custom_call.1} parent=11 // pred_check_branch
          %228 = sbr.rel (%p226) target = $region20
        $region19: #{tpu_custom_call.1} parent=11 // pred_region
          _
        $region20: #{tpu_custom_call.1} parent=11 // pred_fallthru
          _
        // Predicated region
        $region21: #{tpu_custom_call.1} parent=11 // pred_check
          %p229 = pneg %p109
        $region22: #{tpu_custom_call.1} parent=11 // pred_check_branch
          %231 = sbr.rel (%p229) target = $region24
        $region23: #{tpu_custom_call.1} parent=11 // pred_region
          _
        $region24: #{tpu_custom_call.1} parent=11 // pred_fallthru
          _
        // Predicated region
        $region25: #{tpu_custom_call.1} parent=11 // pred_check
          %p232 = pneg %p130
        $region26: #{tpu_custom_call.1} parent=11 // pred_check_branch
          %234 = sbr.rel (%p232) target = $region28
        $region27: #{tpu_custom_call.1} parent=11 // pred_region
          _
        $region28: #{tpu_custom_call.1} parent=11 // pred_fallthru
          _
      $region12: #{tpu_custom_call.1} parent=5 // pred_fallthru
        _
      %p235 = scmp.lt.s32.totalorder %s20, 2
      // Predicated region
      $region29: #{tpu_custom_call.1} parent=5 // pred_check
        %p236 = pneg %p235
      $region30: #{tpu_custom_call.1} parent=5 // pred_check_branch
        %238 = sbr.rel (%p236) target = $region32
      $region31: #{tpu_custom_call.1} parent=5 // pred_region
        // Predicated region
        $region33: #{tpu_custom_call.1} parent=31 // pred_check
          %p239 = pneg %p40
        $region34: #{tpu_custom_call.1} parent=31 // pred_check_branch
          %241 = sbr.rel (%p239) target = $region36
        $region35: #{tpu_custom_call.1} parent=31 // pred_region
          %s242 = smul.u32 32, %s20
          %p243 = scmp.lt.s32.totalorder %s242, 63
          %s244 = scalar_select %p243, %s242, 63
          %s245 = smul.addr %s244, 8
          %s246 = scalar_lea.vmem %s0, %s245
          %s247 = smul.u32 32, %s20
        $region36: #{tpu_custom_call.1} parent=31 // pred_fallthru
          _
      $region32: #{tpu_custom_call.1} parent=5 // pred_fallthru
        _
      %p248 = scmp.le.s32.totalorder 1, %s20
      %p249 = scmp.lt.s32.totalorder %s20, 3
      %p250 = pnand %p248, %p249
      %p251 = pneg %p250
      // Predicated region
      $region37: #{tpu_custom_call.1} parent=5 // pred_check
        _
      $region38: #{tpu_custom_call.1} parent=5 // pred_check_branch
        %253 = sbr.rel (%p250) target = $region40
      $region39: #{tpu_custom_call.1} parent=5 // pred_region
        %s254 = ssub.s32 %s20, 1
        %s255 = smul.u32 32, %s25
        %p256 = scmp.lt.s32.totalorder %s255, 63
        %s257 = scalar_select %p256, %s255, 63
        %s258 = smul.addr %s257, 8
        %s259 = scalar_lea.vmem %s0, %s258
        %p260 = pneg %p46
        %p261 = pneg %p43
        %p262 = pneg %p67
        %p263 = pneg %p64
        %p264 = pneg %p88
        %p265 = pneg %p85
        %p266 = pneg %p109
        %p267 = pneg %p106
        %p268 = pneg %p130
        %p269 = pneg %p127
        %p270 = pneg %p156
        %p271 = pneg %p153
        %s272 = sand.u32 %s143, 1
        %s273 = scalar_lea.sflag [#allocation3], %s272
        %s274 = sand.u32 %s143, 1
        %s275 = smul.addr %s274, 128
        %s276 = scalar_lea.vmem [#allocation2], %s275
        %p277 = pneg %p182
        %p278 = pneg %p179
        %s279 = sand.u32 %s169, 1
        %s280 = scalar_lea.sflag [#allocation5], %s279
        %s281 = sand.u32 %s169, 1
        %s282 = smul.addr %s281, 8
        %s283 = scalar_lea.vmem [#allocation4], %s282
        %p284 = pneg %p208
        %p285 = pneg %p205
        %s286 = smul.u32 32, %s25
        %p287 = scmp.lt.s32.totalorder %s286, 63
        %s288 = scalar_select %p287, %s286, 63
        %s289 = smul.addr %s288, 8
        %s290 = scalar_lea.vmem %s7, %s289
        %s291 = smul.u32 32, %s25
        %p292 = scmp.lt.s32.totalorder %s291, 63
        %s293 = scalar_select %p292, %s291, 63
        %s294 = smul.addr %s293, 8
        %s295 = scalar_lea.vmem %s0, %s294
        %s296 = smul.u32 32, %s25
        %s297 = smul.u32 32, %s25
        %s298 = smul.u32 2, %s25
        %s299 = smul.u32 32, %s25
        %p300 = scmp.lt.s32.totalorder %s299, 63
        %s301 = scalar_select %p300, %s299, 63
        %s302 = smul.addr %s301, 8
        %s303 = scalar_lea.vmem %s7, %s302
        %s304 = smul.u32 32, %s25
        %v306 = vld [vmem:[%s295] sm:$0xff]
        %v307 = vld [vmem:[%s295 + $0x8] sm:$0xff]
        %v308 = vld [vmem:[%s295 + $0x10] sm:$0xff]
        %v309 = vld [vmem:[%s295 + $0x18] sm:$0xff]
        %v310 = vld [vmem:[%s295 + $0x20] sm:$0xff]
        %v311 = vld [vmem:[%s295 + $0x28] sm:$0xff]
        %v312 = vld [vmem:[%s295 + $0x30] sm:$0xff]
        %v313 = vld [vmem:[%s295 + $0x38] sm:$0xff]
        %v314 = vld [vmem:[%s295 + $0x40] sm:$0xff]
        %v315 = vld [vmem:[%s295 + $0x48] sm:$0xff]
        %v316 = vld [vmem:[%s295 + $0x50] sm:$0xff]
        %v317 = vld [vmem:[%s295 + $0x58] sm:$0xff]
        %v318 = vld [vmem:[%s295 + $0x60] sm:$0xff]
        %v319 = vld [vmem:[%s295 + $0x68] sm:$0xff]
        %v320 = vld [vmem:[%s295 + $0x70] sm:$0xff]
        %v321 = vld [vmem:[%s295 + $0x78] sm:$0xff]
        %v322 = vld [vmem:[%s295 + $0x80] sm:$0xff]
        %v323 = vld [vmem:[%s295 + $0x88] sm:$0xff]
        %v324 = vld [vmem:[%s295 + $0x90] sm:$0xff]
        %v325 = vld [vmem:[%s295 + $0x98] sm:$0xff]
        %v326 = vld [vmem:[%s295 + $0xa0] sm:$0xff]
        %v327 = vld [vmem:[%s295 + $0xa8] sm:$0xff]
        %v328 = vld [vmem:[%s295 + $0xb0] sm:$0xff]
        %v329 = vld [vmem:[%s295 + $0xb8] sm:$0xff]
        %v330 = vld [vmem:[%s295 + $0xc0] sm:$0xff]
        %v331 = vld [vmem:[%s295 + $0xc8] sm:$0xff]
        %v332 = vld [vmem:[%s295 + $0xd0] sm:$0xff]
        %v333 = vld [vmem:[%s295 + $0xd8] sm:$0xff]
        %v334 = vld [vmem:[%s295 + $0xe0] sm:$0xff]
        %v335 = vld [vmem:[%s295 + $0xe8] sm:$0xff]
        %v336 = vld [vmem:[%s295 + $0xf0] sm:$0xff]
        %v337 = vld [vmem:[%s295 + $0xf8] sm:$0xff]
        %vm338 = vcmask 261120
        %v339 = vsel %vm338, %v306, 0.0
        %340 = vadd.xlane.f32.xlu0 %v339
        %v341 = vpop.xlane.xlu0 %340
        %v342 = vsel %vm338, %v307, 0.0
        %343 = vadd.xlane.f32.xlu0 %v342
        %v344 = vpop.xlane.xlu0 %343
        %v345 = vsel %vm338, %v308, 0.0
        %346 = vadd.xlane.f32.xlu0 %v345
        %v347 = vpop.xlane.xlu0 %346
        %v348 = vsel %vm338, %v309, 0.0
        %349 = vadd.xlane.f32.xlu0 %v348
        %v350 = vpop.xlane.xlu0 %349
        %v351 = vsel %vm338, %v310, 0.0
        %352 = vadd.xlane.f32.xlu0 %v351
        %v353 = vpop.xlane.xlu0 %352
        %v354 = vsel %vm338, %v311, 0.0
        %355 = vadd.xlane.f32.xlu0 %v354
        %v356 = vpop.xlane.xlu0 %355
        %v357 = vsel %vm338, %v312, 0.0
        %358 = vadd.xlane.f32.xlu0 %v357
        %v359 = vpop.xlane.xlu0 %358
        %v360 = vsel %vm338, %v313, 0.0
        %361 = vadd.xlane.f32.xlu0 %v360
        %v362 = vpop.xlane.xlu0 %361
        %v363 = vsel %vm338, %v314, 0.0
        %364 = vadd.xlane.f32.xlu0 %v363
        %v365 = vpop.xlane.xlu0 %364
        %v366 = vsel %vm338, %v315, 0.0
        %367 = vadd.xlane.f32.xlu0 %v366
        %v368 = vpop.xlane.xlu0 %367
        %v369 = vsel %vm338, %v316, 0.0
        %370 = vadd.xlane.f32.xlu0 %v369
        %v371 = vpop.xlane.xlu0 %370
        %v372 = vsel %vm338, %v317, 0.0
        %373 = vadd.xlane.f32.xlu0 %v372
        %v374 = vpop.xlane.xlu0 %373
        %v375 = vsel %vm338, %v318, 0.0
        %376 = vadd.xlane.f32.xlu0 %v375
        %v377 = vpop.xlane.xlu0 %376
        %v378 = vsel %vm338, %v319, 0.0
        %379 = vadd.xlane.f32.xlu0 %v378
        %v380 = vpop.xlane.xlu0 %379
        %v381 = vsel %vm338, %v320, 0.0
        %382 = vadd.xlane.f32.xlu0 %v381
        %v383 = vpop.xlane.xlu0 %382
        %v384 = vsel %vm338, %v321, 0.0
        %385 = vadd.xlane.f32.xlu0 %v384
        %v386 = vpop.xlane.xlu0 %385
        %v387 = vsel %vm338, %v322, 0.0
        %388 = vadd.xlane.f32.xlu0 %v387
        %v389 = vpop.xlane.xlu0 %388
        %v390 = vsel %vm338, %v323, 0.0
        %391 = vadd.xlane.f32.xlu0 %v390
        %v392 = vpop.xlane.xlu0 %391
        %v393 = vsel %vm338, %v324, 0.0
        %394 = vadd.xlane.f32.xlu0 %v393
        %v395 = vpop.xlane.xlu0 %394
        %v396 = vsel %vm338, %v325, 0.0
        %397 = vadd.xlane.f32.xlu0 %v396
        %v398 = vpop.xlane.xlu0 %397
        %v399 = vsel %vm338, %v326, 0.0
        %400 = vadd.xlane.f32.xlu0 %v399
        %v401 = vpop.xlane.xlu0 %400
        %v402 = vsel %vm338, %v327, 0.0
        %403 = vadd.xlane.f32.xlu0 %v402
        %v404 = vpop.xlane.xlu0 %403
        %v405 = vsel %vm338, %v328, 0.0
        %406 = vadd.xlane.f32.xlu0 %v405
        %v407 = vpop.xlane.xlu0 %406
        %v408 = vsel %vm338, %v329, 0.0
        %409 = vadd.xlane.f32.xlu0 %v408
        %v410 = vpop.xlane.xlu0 %409
        %v411 = vsel %vm338, %v330, 0.0
        %412 = vadd.xlane.f32.xlu0 %v411
        %v413 = vpop.xlane.xlu0 %412
        %v414 = vsel %vm338, %v331, 0.0
        %415 = vadd.xlane.f32.xlu0 %v414
        %v416 = vpop.xlane.xlu0 %415
        %v417 = vsel %vm338, %v332, 0.0
        %418 = vadd.xlane.f32.xlu0 %v417
        %v419 = vpop.xlane.xlu0 %418
        %v420 = vsel %vm338, %v333, 0.0
        %421 = vadd.xlane.f32.xlu0 %v420
        %v422 = vpop.xlane.xlu0 %421
        %v423 = vsel %vm338, %v334, 0.0
        %424 = vadd.xlane.f32.xlu0 %v423
        %v425 = vpop.xlane.xlu0 %424
        %v426 = vsel %vm338, %v335, 0.0
        %427 = vadd.xlane.f32.xlu0 %v426
        %v428 = vpop.xlane.xlu0 %427
        %v429 = vsel %vm338, %v336, 0.0
        %430 = vadd.xlane.f32.xlu0 %v429
        %v431 = vpop.xlane.xlu0 %430
        %v432 = vsel %vm338, %v337, 0.0
        %433 = vadd.xlane.f32.xlu0 %v432
        %v434 = vpop.xlane.xlu0 %433
        %v435 = vrcp.pop 32.0
        %v436 = vmul.f32 %v341, %v435
        %v437 = vmul.f32 %v344, %v435
        %v438 = vmul.f32 %v347, %v435
        %v439 = vmul.f32 %v350, %v435
        %v440 = vmul.f32 %v353, %v435
        %v441 = vmul.f32 %v356, %v435
        %v442 = vmul.f32 %v359, %v435
        %v443 = vmul.f32 %v362, %v435
        %v444 = vmul.f32 %v365, %v435
        %v445 = vmul.f32 %v368, %v435
        %v446 = vmul.f32 %v371, %v435
        %v447 = vmul.f32 %v374, %v435
        %v448 = vmul.f32 %v377, %v435
        %v449 = vmul.f32 %v380, %v435
        %v450 = vmul.f32 %v383, %v435
        %v451 = vmul.f32 %v386, %v435
        %v452 = vmul.f32 %v389, %v435
        %v453 = vmul.f32 %v392, %v435
        %v454 = vmul.f32 %v395, %v435
        %v455 = vmul.f32 %v398, %v435
        %v456 = vmul.f32 %v401, %v435
        %v457 = vmul.f32 %v404, %v435
        %v458 = vmul.f32 %v407, %v435
        %v459 = vmul.f32 %v410, %v435
        %v460 = vmul.f32 %v413, %v435
        %v461 = vmul.f32 %v416, %v435
        %v462 = vmul.f32 %v419, %v435
        %v463 = vmul.f32 %v422, %v435
        %v464 = vmul.f32 %v425, %v435
        %v465 = vmul.f32 %v428, %v435
        %v466 = vmul.f32 %v431, %v435
        %v467 = vmul.f32 %v434, %v435
        %vm468 = vcmp.gt.f32.partialorder %v436, 0.0
        %vm469 = vcmp.gt.f32.partialorder %v437, 0.0
        %vm470 = vcmp.gt.f32.partialorder %v438, 0.0
        %vm471 = vcmp.gt.f32.partialorder %v439, 0.0
        %vm472 = vcmp.gt.f32.partialorder %v440, 0.0
        %vm473 = vcmp.gt.f32.partialorder %v441, 0.0
        %vm474 = vcmp.gt.f32.partialorder %v442, 0.0
        %vm475 = vcmp.gt.f32.partialorder %v443, 0.0
        %vm476 = vcmp.gt.f32.partialorder %v444, 0.0
        %vm477 = vcmp.gt.f32.partialorder %v445, 0.0
        %vm478 = vcmp.gt.f32.partialorder %v446, 0.0
        %vm479 = vcmp.gt.f32.partialorder %v447, 0.0
        %vm480 = vcmp.gt.f32.partialorder %v448, 0.0
        %vm481 = vcmp.gt.f32.partialorder %v449, 0.0
        %vm482 = vcmp.gt.f32.partialorder %v450, 0.0
        %vm483 = vcmp.gt.f32.partialorder %v451, 0.0
        %vm484 = vcmp.gt.f32.partialorder %v452, 0.0
        %vm485 = vcmp.gt.f32.partialorder %v453, 0.0
        %vm486 = vcmp.gt.f32.partialorder %v454, 0.0
        %vm487 = vcmp.gt.f32.partialorder %v455, 0.0
        %vm488 = vcmp.gt.f32.partialorder %v456, 0.0
        %vm489 = vcmp.gt.f32.partialorder %v457, 0.0
        %vm490 = vcmp.gt.f32.partialorder %v458, 0.0
        %vm491 = vcmp.gt.f32.partialorder %v459, 0.0
        %vm492 = vcmp.gt.f32.partialorder %v460, 0.0
        %vm493 = vcmp.gt.f32.partialorder %v461, 0.0
        %vm494 = vcmp.gt.f32.partialorder %v462, 0.0
        %vm495 = vcmp.gt.f32.partialorder %v463, 0.0
        %vm496 = vcmp.gt.f32.partialorder %v464, 0.0
        %vm497 = vcmp.gt.f32.partialorder %v465, 0.0
        %vm498 = vcmp.gt.f32.partialorder %v466, 0.0
        %vm499 = vcmp.gt.f32.partialorder %v467, 0.0
        %v500 = vpack.c.bf16 %v307, %v306
        %v501 = vpack.c.bf16 %v309, %v308
        %v502 = vpack.c.bf16 %v311, %v310
        %v503 = vpack.c.bf16 %v313, %v312
        %v504 = vpack.c.bf16 %v315, %v314
        %v505 = vpack.c.bf16 %v317, %v316
        %v506 = vpack.c.bf16 %v319, %v318
        %v507 = vpack.c.bf16 %v321, %v320
        %v508 = vpack.c.bf16 %v323, %v322
        %v509 = vpack.c.bf16 %v325, %v324
        %v510 = vpack.c.bf16 %v327, %v326
        %v511 = vpack.c.bf16 %v329, %v328
        %v512 = vpack.c.bf16 %v331, %v330
        %v513 = vpack.c.bf16 %v333, %v332
        %v514 = vpack.c.bf16 %v335, %v334
        %v515 = vpack.c.bf16 %v337, %v336
        %v516 = vld [vmem:[%s1] sm:$0xf]
        %v517 = vld [vmem:[%s1 + $0x4] sm:$0xf]
        %v518 = vld [vmem:[%s1 + $0x8] sm:$0xf]
        %v519 = vld [vmem:[%s1 + $0xc] sm:$0xf]
        %v524 = vunpack.c.l.b16 %v516
        %v525 = vunpack.c.l.b16 %v517
        %v526 = vunpack.c.l.b16 %v518
        %v527 = vunpack.c.l.b16 %v519
        %v528 = vpack.c.b16 %v525, %v524
        %v529 = vpack.c.b16 %v527, %v526
        %v533 = vsel %vm338, %v500, 0
        %v536 = vsel %vm338, %v501, 0
        %v539 = vsel %vm338, %v502, 0
        %v542 = vsel %vm338, %v503, 0
        %v545 = vsel %vm338, %v504, 0
        %v548 = vsel %vm338, %v505, 0
        %v551 = vsel %vm338, %v506, 0
        %v554 = vsel %vm338, %v507, 0
        %v557 = vsel %vm338, %v508, 0
        %v560 = vsel %vm338, %v509, 0
        %v563 = vsel %vm338, %v510, 0
        %v566 = vsel %vm338, %v511, 0
        %v569 = vsel %vm338, %v512, 0
        %v572 = vsel %vm338, %v513, 0
        %v575 = vsel %vm338, %v514, 0
        %v578 = vsel %vm338, %v515, 0
        %580 = vmatprep.subr.bf16.mxu0 0
        %581 = vmatpush1.bf16.msra.mxu0 %v528
        %582 = vmatprep.subr.bf16.mxu0 0
        %583 = vmatpush1.bf16.msra.mxu0 %v529
        %584 = vmatprep.subr.bf16.mxu0 0
        %585 = vmatpush1.bf16.msra.mxu0 0
        %586 = vmatprep.subr.bf16.mxu0 0
        %587 = vmatpush1.bf16.msra.mxu0 0
        %588 = vmatprep.subr.bf16.mxu0 0
        %589 = vmatpush1.bf16.msra.mxu0 0
        %590 = vmatprep.subr.bf16.mxu0 0
        %591 = vmatpush1.bf16.msra.mxu0 0
        %592 = vmatprep.subr.bf16.mxu0 0
        %593 = vmatpush1.bf16.msra.mxu0 0
        %594 = vmatprep.subr.bf16.mxu0 0
        %595 = vmatpush1.bf16.msra.mxu0 0
        %596 = vmatprep.subr.bf16.mxu0 0
        %597 = vmatpush1.bf16.msra.mxu0 0
        %598 = vmatprep.subr.bf16.mxu0 0
        %599 = vmatpush1.bf16.msra.mxu0 0
        %600 = vmatprep.subr.bf16.mxu0 0
        %601 = vmatpush1.bf16.msra.mxu0 0
        %602 = vmatprep.subr.bf16.mxu0 0
        %603 = vmatpush1.bf16.msra.mxu0 0
        %604 = vmatprep.subr.bf16.mxu0 0
        %605 = vmatpush1.bf16.msra.mxu0 0
        %606 = vmatprep.subr.bf16.mxu0 0
        %607 = vmatpush1.bf16.msra.mxu0 0
        %608 = vmatprep.subr.bf16.mxu0 0
        %609 = vmatpush1.bf16.msra.mxu0 0
        %610 = vmatprep.subr.bf16.mxu0 0
        %611 = vmatpush1.bf16.msra.mxu0 0
        %612 = vmatprep.mubr.bf16.mxu0 0
        %613 = vmatmul.mubr.bf16.gmra.mrb[0].mxu0 %v533
        %v614 = vpop.f32.mrb[0].mxu0
        %v615 = vadd.f32 0.0, %v614
        %v616 = vpop.f32.mrb[0].mxu0
        %v617 = vpop.f32.mrb[0].mxu0
        %v618 = vadd.f32 0.0, %v617
        %v619 = vpop.f32.mrb[0].mxu0
        %620 = vmatprep.mubr.bf16.mxu0 0
        %621 = vmatmul.mubr.bf16.gmra.mrb[0].mxu0 %v536
        %v622 = vpop.f32.mrb[0].mxu0
        %v623 = vadd.f32 0.0, %v622
        %v624 = vpop.f32.mrb[0].mxu0
        %v625 = vpop.f32.mrb[0].mxu0
        %v626 = vadd.f32 0.0, %v625
        %v627 = vpop.f32.mrb[0].mxu0
        %628 = vmatprep.mubr.bf16.mxu0 0
        %629 = vmatmul.mubr.bf16.gmra.mrb[0].mxu0 %v539
        %v630 = vpop.f32.mrb[0].mxu0
        %v631 = vadd.f32 0.0, %v630
        %v632 = vpop.f32.mrb[0].mxu0
        %v633 = vpop.f32.mrb[0].mxu0
        %v634 = vadd.f32 0.0, %v633
        %v635 = vpop.f32.mrb[0].mxu0
        %636 = vmatprep.mubr.bf16.mxu0 0
        %637 = vmatmul.mubr.bf16.gmra.mrb[0].mxu0 %v542
        %v638 = vpop.f32.mrb[0].mxu0
        %v639 = vadd.f32 0.0, %v638
        %v640 = vpop.f32.mrb[0].mxu0
        %v641 = vpop.f32.mrb[0].mxu0
        %v642 = vadd.f32 0.0, %v641
        %v643 = vpop.f32.mrb[0].mxu0
        %644 = vmatprep.mubr.bf16.mxu0 0
        %645 = vmatmul.mubr.bf16.gmra.mrb[0].mxu0 %v545
        %v646 = vpop.f32.mrb[0].mxu0
        %v647 = vadd.f32 0.0, %v646
        %v648 = vpop.f32.mrb[0].mxu0
        %v649 = vpop.f32.mrb[0].mxu0
        %v650 = vadd.f32 0.0, %v649
        %v651 = vpop.f32.mrb[0].mxu0
        %652 = vmatprep.mubr.bf16.mxu0 0
        %653 = vmatmul.mubr.bf16.gmra.mrb[0].mxu0 %v548
        %v654 = vpop.f32.mrb[0].mxu0
        %v655 = vadd.f32 0.0, %v654
        %v656 = vpop.f32.mrb[0].mxu0
        %v657 = vpop.f32.mrb[0].mxu0
        %v658 = vadd.f32 0.0, %v657
        %v659 = vpop.f32.mrb[0].mxu0
        %660 = vmatprep.mubr.bf16.mxu0 0
        %661 = vmatmul.mubr.bf16.gmra.mrb[0].mxu0 %v551
        %v662 = vpop.f32.mrb[0].mxu0
        %v663 = vadd.f32 0.0, %v662
        %v664 = vpop.f32.mrb[0].mxu0
        %v665 = vpop.f32.mrb[0].mxu0
        %v666 = vadd.f32 0.0, %v665
        %v667 = vpop.f32.mrb[0].mxu0
        %668 = vmatprep.mubr.bf16.mxu0 0
        %669 = vmatmul.mubr.bf16.gmra.mrb[0].mxu0 %v554
        %v670 = vpop.f32.mrb[0].mxu0
        %v671 = vadd.f32 0.0, %v670
        %v672 = vpop.f32.mrb[0].mxu0
        %v673 = vpop.f32.mrb[0].mxu0
        %v674 = vadd.f32 0.0, %v673
        %v675 = vpop.f32.mrb[0].mxu0
        %676 = vmatprep.mubr.bf16.mxu0 0
        %677 = vmatmul.mubr.bf16.gmra.mrb[0].mxu0 %v557
        %v678 = vpop.f32.mrb[0].mxu0
        %v679 = vadd.f32 0.0, %v678
        %v680 = vpop.f32.mrb[0].mxu0
        %v681 = vpop.f32.mrb[0].mxu0
        %v682 = vadd.f32 0.0, %v681
        %v683 = vpop.f32.mrb[0].mxu0
        %684 = vmatprep.mubr.bf16.mxu0 0
        %685 = vmatmul.mubr.bf16.gmra.mrb[0].mxu0 %v560
        %v686 = vpop.f32.mrb[0].mxu0
        %v687 = vadd.f32 0.0, %v686
        %v688 = vpop.f32.mrb[0].mxu0
        %v689 = vpop.f32.mrb[0].mxu0
        %v690 = vadd.f32 0.0, %v689
        %v691 = vpop.f32.mrb[0].mxu0
        %692 = vmatprep.mubr.bf16.mxu0 0
        %693 = vmatmul.mubr.bf16.gmra.mrb[0].mxu0 %v563
        %v694 = vpop.f32.mrb[0].mxu0
        %v695 = vadd.f32 0.0, %v694
        %v696 = vpop.f32.mrb[0].mxu0
        %v697 = vpop.f32.mrb[0].mxu0
        %v698 = vadd.f32 0.0, %v697
        %v699 = vpop.f32.mrb[0].mxu0
        %700 = vmatprep.mubr.bf16.mxu0 0
        %701 = vmatmul.mubr.bf16.gmra.mrb[0].mxu0 %v566
        %v702 = vpop.f32.mrb[0].mxu0
        %v703 = vadd.f32 0.0, %v702
        %v704 = vpop.f32.mrb[0].mxu0
        %v705 = vpop.f32.mrb[0].mxu0
        %v706 = vadd.f32 0.0, %v705
        %v707 = vpop.f32.mrb[0].mxu0
        %708 = vmatprep.mubr.bf16.mxu0 0
        %709 = vmatmul.mubr.bf16.gmra.mrb[0].mxu0 %v569
        %v710 = vpop.f32.mrb[0].mxu0
        %v711 = vadd.f32 0.0, %v710
        %v712 = vpop.f32.mrb[0].mxu0
        %v713 = vpop.f32.mrb[0].mxu0
        %v714 = vadd.f32 0.0, %v713
        %v715 = vpop.f32.mrb[0].mxu0
        %716 = vmatprep.mubr.bf16.mxu0 0
        %717 = vmatmul.mubr.bf16.gmra.mrb[0].mxu0 %v572
        %v718 = vpop.f32.mrb[0].mxu0
        %v719 = vadd.f32 0.0, %v718
        %v720 = vpop.f32.mrb[0].mxu0
        %v721 = vpop.f32.mrb[0].mxu0
        %v722 = vadd.f32 0.0, %v721
        %v723 = vpop.f32.mrb[0].mxu0
        %724 = vmatprep.mubr.bf16.mxu0 0
        %725 = vmatmul.mubr.bf16.gmra.mrb[0].mxu0 %v575
        %v726 = vpop.f32.mrb[0].mxu0
        %v727 = vadd.f32 0.0, %v726
        %v728 = vpop.f32.mrb[0].mxu0
        %v729 = vpop.f32.mrb[0].mxu0
        %v730 = vadd.f32 0.0, %v729
        %v731 = vpop.f32.mrb[0].mxu0
        %732 = vmatprep.mubr.bf16.mxu0 0
        %733 = vmatmul.mubr.bf16.gmra.mrb[0].mxu0 %v578
        %v734 = vpop.f32.mrb[0].mxu0
        %v735 = vadd.f32 0.0, %v734
        %v736 = vpop.f32.mrb[0].mxu0
        %v737 = vpop.f32.mrb[0].mxu0
        %v738 = vadd.f32 0.0, %v737
        %v739 = vpop.f32.mrb[0].mxu0
        %740 = vdwg.mxu0
        %v741 = vmax.f32 %v615, 0.0
        %v742 = vmax.f32 %v618, 0.0
        %v743 = vmax.f32 %v623, 0.0
        %v744 = vmax.f32 %v626, 0.0
        %v745 = vmax.f32 %v631, 0.0
        %v746 = vmax.f32 %v634, 0.0
        %v747 = vmax.f32 %v639, 0.0
        %v748 = vmax.f32 %v642, 0.0
        %v749 = vmax.f32 %v647, 0.0
        %v750 = vmax.f32 %v650, 0.0
        %v751 = vmax.f32 %v655, 0.0
        %v752 = vmax.f32 %v658, 0.0
        %v753 = vmax.f32 %v663, 0.0
        %v754 = vmax.f32 %v666, 0.0
        %v755 = vmax.f32 %v671, 0.0
        %v756 = vmax.f32 %v674, 0.0
        %v757 = vmax.f32 %v679, 0.0
        %v758 = vmax.f32 %v682, 0.0
        %v759 = vmax.f32 %v687, 0.0
        %v760 = vmax.f32 %v690, 0.0
        %v761 = vmax.f32 %v695, 0.0
        %v762 = vmax.f32 %v698, 0.0
        %v763 = vmax.f32 %v703, 0.0
        %v764 = vmax.f32 %v706, 0.0
        %v765 = vmax.f32 %v711, 0.0
        %v766 = vmax.f32 %v714, 0.0
        %v767 = vmax.f32 %v719, 0.0
        %v768 = vmax.f32 %v722, 0.0
        %v769 = vmax.f32 %v727, 0.0
        %v770 = vmax.f32 %v730, 0.0
        %v771 = vmax.f32 %v735, 0.0
        %v772 = vmax.f32 %v738, 0.0
        %v773 = vpack.c.bf16 %v742, %v741
        %v774 = vpack.c.bf16 %v744, %v743
        %v775 = vpack.c.bf16 %v746, %v745
        %v776 = vpack.c.bf16 %v748, %v747
        %v777 = vpack.c.bf16 %v750, %v749
        %v778 = vpack.c.bf16 %v752, %v751
        %v779 = vpack.c.bf16 %v754, %v753
        %v780 = vpack.c.bf16 %v756, %v755
        %v781 = vpack.c.bf16 %v758, %v757
        %v782 = vpack.c.bf16 %v760, %v759
        %v783 = vpack.c.bf16 %v762, %v761
        %v784 = vpack.c.bf16 %v764, %v763
        %v785 = vpack.c.bf16 %v766, %v765
        %v786 = vpack.c.bf16 %v768, %v767
        %v787 = vpack.c.bf16 %v770, %v769
        %v788 = vpack.c.bf16 %v772, %v771
        %v789 = vld [vmem:[%s2] sm:$0xff]
        %v790 = vld [vmem:[%s2 + $0x8] sm:$0xff]
        %v791 = vld [vmem:[%s2 + $0x10] sm:$0xff]
        %v792 = vld [vmem:[%s2 + $0x18] sm:$0xff]
        %v797 = vunpack.c.l.b16 %v789
        %v798 = vunpack.c.h.b16 %v789
        %v799 = vunpack.c.l.b16 %v790
        %v800 = vunpack.c.h.b16 %v790
        %v801 = vunpack.c.l.b16 %v791
        %v802 = vunpack.c.h.b16 %v791
        %v803 = vunpack.c.l.b16 %v792
        %v804 = vunpack.c.h.b16 %v792
        %v805 = vpack.c.b16 %v799, %v797
        %v806 = vpack.c.b16 %v800, %v798
        %v807 = vpack.c.b16 %v803, %v801
        %v808 = vpack.c.b16 %v804, %v802
        %v814 = vsel %vm338, %v773, 0
        %v817 = vsel %vm338, %v774, 0
        %v820 = vsel %vm338, %v775, 0
        %v823 = vsel %vm338, %v776, 0
        %v826 = vsel %vm338, %v777, 0
        %v829 = vsel %vm338, %v778, 0
        %v832 = vsel %vm338, %v779, 0
        %v835 = vsel %vm338, %v780, 0
        %v838 = vsel %vm338, %v781, 0
        %v841 = vsel %vm338, %v782, 0
        %v844 = vsel %vm338, %v783, 0
        %v847 = vsel %vm338, %v784, 0
        %v850 = vsel %vm338, %v785, 0
        %v853 = vsel %vm338, %v786, 0
        %v856 = vsel %vm338, %v787, 0
        %v859 = vsel %vm338, %v788, 0
        %861 = vmatprep.subr.bf16.mxu0 %v806
        %862 = vmatpush1.bf16.msra.mxu0 %v805
        %863 = vmatprep.subr.bf16.mxu0 %v808
        %864 = vmatpush1.bf16.msra.mxu0 %v807
        %865 = vmatprep.subr.bf16.mxu0 0
        %866 = vmatpush1.bf16.msra.mxu0 0
        %867 = vmatprep.subr.bf16.mxu0 0
        %868 = vmatpush1.bf16.msra.mxu0 0
        %869 = vmatprep.subr.bf16.mxu0 0
        %870 = vmatpush1.bf16.msra.mxu0 0
        %871 = vmatprep.subr.bf16.mxu0 0
        %872 = vmatpush1.bf16.msra.mxu0 0
        %873 = vmatprep.subr.bf16.mxu0 0
        %874 = vmatpush1.bf16.msra.mxu0 0
        %875 = vmatprep.subr.bf16.mxu0 0
        %876 = vmatpush1.bf16.msra.mxu0 0
        %877 = vmatprep.subr.bf16.mxu0 0
        %878 = vmatpush1.bf16.msra.mxu0 0
        %879 = vmatprep.subr.bf16.mxu0 0
        %880 = vmatpush1.bf16.msra.mxu0 0
        %881 = vmatprep.subr.bf16.mxu0 0
        %882 = vmatpush1.bf16.msra.mxu0 0
        %883 = vmatprep.subr.bf16.mxu0 0
        %884 = vmatpush1.bf16.msra.mxu0 0
        %885 = vmatprep.subr.bf16.mxu0 0
        %886 = vmatpush1.bf16.msra.mxu0 0
        %887 = vmatprep.subr.bf16.mxu0 0
        %888 = vmatpush1.bf16.msra.mxu0 0
        %889 = vmatprep.subr.bf16.mxu0 0
        %890 = vmatpush1.bf16.msra.mxu0 0
        %891 = vmatprep.subr.bf16.mxu0 0
        %892 = vmatpush1.bf16.msra.mxu0 0
        %893 = vmatprep.mubr.bf16.mxu0 0
        %894 = vmatmul.mubr.bf16.gmra.mrb[0].mxu0 %v814
        %v895 = vpop.f32.mrb[0].mxu0
        %v896 = vadd.f32 0.0, %v895
        %v897 = vpop.f32.mrb[0].mxu0
        %v898 = vadd.f32 0.0, %v897
        %v899 = vpop.f32.mrb[0].mxu0
        %v900 = vadd.f32 0.0, %v899
        %v901 = vpop.f32.mrb[0].mxu0
        %v902 = vadd.f32 0.0, %v901
        %903 = vmatprep.mubr.bf16.mxu0 0
        %904 = vmatmul.mubr.bf16.gmra.mrb[0].mxu0 %v817
        %v905 = vpop.f32.mrb[0].mxu0
        %v906 = vadd.f32 0.0, %v905
        %v907 = vpop.f32.mrb[0].mxu0
        %v908 = vadd.f32 0.0, %v907
        %v909 = vpop.f32.mrb[0].mxu0
        %v910 = vadd.f32 0.0, %v909
        %v911 = vpop.f32.mrb[0].mxu0
        %v912 = vadd.f32 0.0, %v911
        %913 = vmatprep.mubr.bf16.mxu0 0
        %914 = vmatmul.mubr.bf16.gmra.mrb[0].mxu0 %v820
        %v915 = vpop.f32.mrb[0].mxu0
        %v916 = vadd.f32 0.0, %v915
        %v917 = vpop.f32.mrb[0].mxu0
        %v918 = vadd.f32 0.0, %v917
        %v919 = vpop.f32.mrb[0].mxu0
        %v920 = vadd.f32 0.0, %v919
        %v921 = vpop.f32.mrb[0].mxu0
        %v922 = vadd.f32 0.0, %v921
        %923 = vmatprep.mubr.bf16.mxu0 0
        %924 = vmatmul.mubr.bf16.gmra.mrb[0].mxu0 %v823
        %v925 = vpop.f32.mrb[0].mxu0
        %v926 = vadd.f32 0.0, %v925
        %v927 = vpop.f32.mrb[0].mxu0
        %v928 = vadd.f32 0.0, %v927
        %v929 = vpop.f32.mrb[0].mxu0
        %v930 = vadd.f32 0.0, %v929
        %v931 = vpop.f32.mrb[0].mxu0
        %v932 = vadd.f32 0.0, %v931
        %933 = vmatprep.mubr.bf16.mxu0 0
        %934 = vmatmul.mubr.bf16.gmra.mrb[0].mxu0 %v826
        %v935 = vpop.f32.mrb[0].mxu0
        %v936 = vadd.f32 0.0, %v935
        %v937 = vpop.f32.mrb[0].mxu0
        %v938 = vadd.f32 0.0, %v937
        %v939 = vpop.f32.mrb[0].mxu0
        %v940 = vadd.f32 0.0, %v939
        %v941 = vpop.f32.mrb[0].mxu0
        %v942 = vadd.f32 0.0, %v941
        %943 = vmatprep.mubr.bf16.mxu0 0
        %944 = vmatmul.mubr.bf16.gmra.mrb[0].mxu0 %v829
        %v945 = vpop.f32.mrb[0].mxu0
        %v946 = vadd.f32 0.0, %v945
        %v947 = vpop.f32.mrb[0].mxu0
        %v948 = vadd.f32 0.0, %v947
        %v949 = vpop.f32.mrb[0].mxu0
        %v950 = vadd.f32 0.0, %v949
        %v951 = vpop.f32.mrb[0].mxu0
        %v952 = vadd.f32 0.0, %v951
        %953 = vmatprep.mubr.bf16.mxu0 0
        %954 = vmatmul.mubr.bf16.gmra.mrb[0].mxu0 %v832
        %v955 = vpop.f32.mrb[0].mxu0
        %v956 = vadd.f32 0.0, %v955
        %v957 = vpop.f32.mrb[0].mxu0
        %v958 = vadd.f32 0.0, %v957
        %v959 = vpop.f32.mrb[0].mxu0
        %v960 = vadd.f32 0.0, %v959
        %v961 = vpop.f32.mrb[0].mxu0
        %v962 = vadd.f32 0.0, %v961
        %963 = vmatprep.mubr.bf16.mxu0 0
        %964 = vmatmul.mubr.bf16.gmra.mrb[0].mxu0 %v835
        %v965 = vpop.f32.mrb[0].mxu0
        %v966 = vadd.f32 0.0, %v965
        %v967 = vpop.f32.mrb[0].mxu0
        %v968 = vadd.f32 0.0, %v967
        %v969 = vpop.f32.mrb[0].mxu0
        %v970 = vadd.f32 0.0, %v969
        %v971 = vpop.f32.mrb[0].mxu0
        %v972 = vadd.f32 0.0, %v971
        %973 = vmatprep.mubr.bf16.mxu0 0
        %974 = vmatmul.mubr.bf16.gmra.mrb[0].mxu0 %v838
        %v975 = vpop.f32.mrb[0].mxu0
        %v976 = vadd.f32 0.0, %v975
        %v977 = vpop.f32.mrb[0].mxu0
        %v978 = vadd.f32 0.0, %v977
        %v979 = vpop.f32.mrb[0].mxu0
        %v980 = vadd.f32 0.0, %v979
        %v981 = vpop.f32.mrb[0].mxu0
        %v982 = vadd.f32 0.0, %v981
        %983 = vmatprep.mubr.bf16.mxu0 0
        %984 = vmatmul.mubr.bf16.gmra.mrb[0].mxu0 %v841
        %v985 = vpop.f32.mrb[0].mxu0
        %v986 = vadd.f32 0.0, %v985
        %v987 = vpop.f32.mrb[0].mxu0
        %v988 = vadd.f32 0.0, %v987
        %v989 = vpop.f32.mrb[0].mxu0
        %v990 = vadd.f32 0.0, %v989
        %v991 = vpop.f32.mrb[0].mxu0
        %v992 = vadd.f32 0.0, %v991
        %993 = vmatprep.mubr.bf16.mxu0 0
        %994 = vmatmul.mubr.bf16.gmra.mrb[0].mxu0 %v844
        %v995 = vpop.f32.mrb[0].mxu0
        %v996 = vadd.f32 0.0, %v995
        %v997 = vpop.f32.mrb[0].mxu0
        %v998 = vadd.f32 0.0, %v997
        %v999 = vpop.f32.mrb[0].mxu0
        %v1000 = vadd.f32 0.0, %v999
        %v1001 = vpop.f32.mrb[0].mxu0
        %v1002 = vadd.f32 0.0, %v1001
        %1003 = vmatprep.mubr.bf16.mxu0 0
        %1004 = vmatmul.mubr.bf16.gmra.mrb[0].mxu0 %v847
        %v1005 = vpop.f32.mrb[0].mxu0
        %v1006 = vadd.f32 0.0, %v1005
        %v1007 = vpop.f32.mrb[0].mxu0
        %v1008 = vadd.f32 0.0, %v1007
        %v1009 = vpop.f32.mrb[0].mxu0
        %v1010 = vadd.f32 0.0, %v1009
        %v1011 = vpop.f32.mrb[0].mxu0
        %v1012 = vadd.f32 0.0, %v1011
        %1013 = vmatprep.mubr.bf16.mxu0 0
        %1014 = vmatmul.mubr.bf16.gmra.mrb[0].mxu0 %v850
        %v1015 = vpop.f32.mrb[0].mxu0
        %v1016 = vadd.f32 0.0, %v1015
        %v1017 = vpop.f32.mrb[0].mxu0
        %v1018 = vadd.f32 0.0, %v1017
        %v1019 = vpop.f32.mrb[0].mxu0
        %v1020 = vadd.f32 0.0, %v1019
        %v1021 = vpop.f32.mrb[0].mxu0
        %v1022 = vadd.f32 0.0, %v1021
        %1023 = vmatprep.mubr.bf16.mxu0 0
        %1024 = vmatmul.mubr.bf16.gmra.mrb[0].mxu0 %v853
        %v1025 = vpop.f32.mrb[0].mxu0
        %v1026 = vadd.f32 0.0, %v1025
        %v1027 = vpop.f32.mrb[0].mxu0
        %v1028 = vadd.f32 0.0, %v1027
        %v1029 = vpop.f32.mrb[0].mxu0
        %v1030 = vadd.f32 0.0, %v1029
        %v1031 = vpop.f32.mrb[0].mxu0
        %v1032 = vadd.f32 0.0, %v1031
        %1033 = vmatprep.mubr.bf16.mxu0 0
        %1034 = vmatmul.mubr.bf16.gmra.mrb[0].mxu0 %v856
        %v1035 = vpop.f32.mrb[0].mxu0
        %v1036 = vadd.f32 0.0, %v1035
        %v1037 = vpop.f32.mrb[0].mxu0
        %v1038 = vadd.f32 0.0, %v1037
        %v1039 = vpop.f32.mrb[0].mxu0
        %v1040 = vadd.f32 0.0, %v1039
        %v1041 = vpop.f32.mrb[0].mxu0
        %v1042 = vadd.f32 0.0, %v1041
        %1043 = vmatprep.mubr.bf16.mxu0 0
        %1044 = vmatmul.mubr.bf16.gmra.mrb[0].mxu0 %v859
        %v1045 = vpop.f32.mrb[0].mxu0
        %v1046 = vadd.f32 0.0, %v1045
        %v1047 = vpop.f32.mrb[0].mxu0
        %v1048 = vadd.f32 0.0, %v1047
        %v1049 = vpop.f32.mrb[0].mxu0
        %v1050 = vadd.f32 0.0, %v1049
        %v1051 = vpop.f32.mrb[0].mxu0
        %v1052 = vadd.f32 0.0, %v1051
        %1053 = vdwg.mxu0
        %v1054 = vmax.f32 %v896, 0.0
        %v1055 = vmax.f32 %v898, 0.0
        %v1056 = vmax.f32 %v900, 0.0
        %v1057 = vmax.f32 %v902, 0.0
        %v1058 = vmax.f32 %v906, 0.0
        %v1059 = vmax.f32 %v908, 0.0
        %v1060 = vmax.f32 %v910, 0.0
        %v1061 = vmax.f32 %v912, 0.0
        %v1062 = vmax.f32 %v916, 0.0
        %v1063 = vmax.f32 %v918, 0.0
        %v1064 = vmax.f32 %v920, 0.0
        %v1065 = vmax.f32 %v922, 0.0
        %v1066 = vmax.f32 %v926, 0.0
        %v1067 = vmax.f32 %v928, 0.0
        %v1068 = vmax.f32 %v930, 0.0
        %v1069 = vmax.f32 %v932, 0.0
        %v1070 = vmax.f32 %v936, 0.0
        %v1071 = vmax.f32 %v938, 0.0
        %v1072 = vmax.f32 %v940, 0.0
        %v1073 = vmax.f32 %v942, 0.0
        %v1074 = vmax.f32 %v946, 0.0
        %v1075 = vmax.f32 %v948, 0.0
        %v1076 = vmax.f32 %v950, 0.0
        %v1077 = vmax.f32 %v952, 0.0
        %v1078 = vmax.f32 %v956, 0.0
        %v1079 = vmax.f32 %v958, 0.0
        %v1080 = vmax.f32 %v960, 0.0
        %v1081 = vmax.f32 %v962, 0.0
        %v1082 = vmax.f32 %v966, 0.0
        %v1083 = vmax.f32 %v968, 0.0
        %v1084 = vmax.f32 %v970, 0.0
        %v1085 = vmax.f32 %v972, 0.0
        %v1086 = vmax.f32 %v976, 0.0
        %v1087 = vmax.f32 %v978, 0.0
        %v1088 = vmax.f32 %v980, 0.0
        %v1089 = vmax.f32 %v982, 0.0
        %v1090 = vmax.f32 %v986, 0.0
        %v1091 = vmax.f32 %v988, 0.0
        %v1092 = vmax.f32 %v990, 0.0
        %v1093 = vmax.f32 %v992, 0.0
        %v1094 = vmax.f32 %v996, 0.0
        %v1095 = vmax.f32 %v998, 0.0
        %v1096 = vmax.f32 %v1000, 0.0
        %v1097 = vmax.f32 %v1002, 0.0
        %v1098 = vmax.f32 %v1006, 0.0
        %v1099 = vmax.f32 %v1008, 0.0
        %v1100 = vmax.f32 %v1010, 0.0
        %v1101 = vmax.f32 %v1012, 0.0
        %v1102 = vmax.f32 %v1016, 0.0
        %v1103 = vmax.f32 %v1018, 0.0
        %v1104 = vmax.f32 %v1020, 0.0
        %v1105 = vmax.f32 %v1022, 0.0
        %v1106 = vmax.f32 %v1026, 0.0
        %v1107 = vmax.f32 %v1028, 0.0
        %v1108 = vmax.f32 %v1030, 0.0
        %v1109 = vmax.f32 %v1032, 0.0
        %v1110 = vmax.f32 %v1036, 0.0
        %v1111 = vmax.f32 %v1038, 0.0
        %v1112 = vmax.f32 %v1040, 0.0
        %v1113 = vmax.f32 %v1042, 0.0
        %v1114 = vmax.f32 %v1046, 0.0
        %v1115 = vmax.f32 %v1048, 0.0
        %v1116 = vmax.f32 %v1050, 0.0
        %v1117 = vmax.f32 %v1052, 0.0
        %v1118 = vsel %vm468, 1, 0
        %v1119 = vsel %vm469, 1, 0
        %v1120 = vsel %vm470, 1, 0
        %v1121 = vsel %vm471, 1, 0
        %v1122 = vsel %vm472, 1, 0
        %v1123 = vsel %vm473, 1, 0
        %v1124 = vsel %vm474, 1, 0
        %v1125 = vsel %vm475, 1, 0
        %v1126 = vsel %vm476, 1, 0
        %v1127 = vsel %vm477, 1, 0
        %v1128 = vsel %vm478, 1, 0
        %v1129 = vsel %vm479, 1, 0
        %v1130 = vsel %vm480, 1, 0
        %v1131 = vsel %vm481, 1, 0
        %v1132 = vsel %vm482, 1, 0
        %v1133 = vsel %vm483, 1, 0
        %v1134 = vsel %vm484, 1, 0
        %v1135 = vsel %vm485, 1, 0
        %v1136 = vsel %vm486, 1, 0
        %v1137 = vsel %vm487, 1, 0
        %v1138 = vsel %vm488, 1, 0
        %v1139 = vsel %vm489, 1, 0
        %v1140 = vsel %vm490, 1, 0
        %v1141 = vsel %vm491, 1, 0
        %v1142 = vsel %vm492, 1, 0
        %v1143 = vsel %vm493, 1, 0
        %v1144 = vsel %vm494, 1, 0
        %v1145 = vsel %vm495, 1, 0
        %v1146 = vsel %vm496, 1, 0
        %v1147 = vsel %vm497, 1, 0
        %v1148 = vsel %vm498, 1, 0
        %v1149 = vsel %vm499, 1, 0
        %vm1150 = vcmp.eq.s32.totalorder %v1118, 1
        %vm1151 = vcmp.eq.s32.totalorder %v1119, 1
        %vm1152 = vcmp.eq.s32.totalorder %v1120, 1
        %vm1153 = vcmp.eq.s32.totalorder %v1121, 1
        %vm1154 = vcmp.eq.s32.totalorder %v1122, 1
        %vm1155 = vcmp.eq.s32.totalorder %v1123, 1
        %vm1156 = vcmp.eq.s32.totalorder %v1124, 1
        %vm1157 = vcmp.eq.s32.totalorder %v1125, 1
        %vm1158 = vcmp.eq.s32.totalorder %v1126, 1
        %vm1159 = vcmp.eq.s32.totalorder %v1127, 1
        %vm1160 = vcmp.eq.s32.totalorder %v1128, 1
        %vm1161 = vcmp.eq.s32.totalorder %v1129, 1
        %vm1162 = vcmp.eq.s32.totalorder %v1130, 1
        %vm1163 = vcmp.eq.s32.totalorder %v1131, 1
        %vm1164 = vcmp.eq.s32.totalorder %v1132, 1
        %vm1165 = vcmp.eq.s32.totalorder %v1133, 1
        %vm1166 = vcmp.eq.s32.totalorder %v1134, 1
        %vm1167 = vcmp.eq.s32.totalorder %v1135, 1
        %vm1168 = vcmp.eq.s32.totalorder %v1136, 1
        %vm1169 = vcmp.eq.s32.totalorder %v1137, 1
        %vm1170 = vcmp.eq.s32.totalorder %v1138, 1
        %vm1171 = vcmp.eq.s32.totalorder %v1139, 1
        %vm1172 = vcmp.eq.s32.totalorder %v1140, 1
        %vm1173 = vcmp.eq.s32.totalorder %v1141, 1
        %vm1174 = vcmp.eq.s32.totalorder %v1142, 1
        %vm1175 = vcmp.eq.s32.totalorder %v1143, 1
        %vm1176 = vcmp.eq.s32.totalorder %v1144, 1
        %vm1177 = vcmp.eq.s32.totalorder %v1145, 1
        %vm1178 = vcmp.eq.s32.totalorder %v1146, 1
        %vm1179 = vcmp.eq.s32.totalorder %v1147, 1
        %vm1180 = vcmp.eq.s32.totalorder %v1148, 1
        %vm1181 = vcmp.eq.s32.totalorder %v1149, 1
        %v1182 = vsel %vm1150, %v1055, %v1054
        %v1183 = vsel %vm1151, %v1057, %v1056
        %v1184 = vsel %vm1152, %v1059, %v1058
        %v1185 = vsel %vm1153, %v1061, %v1060
        %v1186 = vsel %vm1154, %v1063, %v1062
        %v1187 = vsel %vm1155, %v1065, %v1064
        %v1188 = vsel %vm1156, %v1067, %v1066
        %v1189 = vsel %vm1157, %v1069, %v1068
        %v1190 = vsel %vm1158, %v1071, %v1070
        %v1191 = vsel %vm1159, %v1073, %v1072
        %v1192 = vsel %vm1160, %v1075, %v1074
        %v1193 = vsel %vm1161, %v1077, %v1076
        %v1194 = vsel %vm1162, %v1079, %v1078
        %v1195 = vsel %vm1163, %v1081, %v1080
        %v1196 = vsel %vm1164, %v1083, %v1082
        %v1197 = vsel %vm1165, %v1085, %v1084
        %v1198 = vsel %vm1166, %v1087, %v1086
        %v1199 = vsel %vm1167, %v1089, %v1088
        %v1200 = vsel %vm1168, %v1091, %v1090
        %v1201 = vsel %vm1169, %v1093, %v1092
        %v1202 = vsel %vm1170, %v1095, %v1094
        %v1203 = vsel %vm1171, %v1097, %v1096
        %v1204 = vsel %vm1172, %v1099, %v1098
        %v1205 = vsel %vm1173, %v1101, %v1100
        %v1206 = vsel %vm1174, %v1103, %v1102
        %v1207 = vsel %vm1175, %v1105, %v1104
        %v1208 = vsel %vm1176, %v1107, %v1106
        %v1209 = vsel %vm1177, %v1109, %v1108
        %v1210 = vsel %vm1178, %v1111, %v1110
        %v1211 = vsel %vm1179, %v1113, %v1112
        %v1212 = vsel %vm1180, %v1115, %v1114
        %v1213 = vsel %vm1181, %v1117, %v1116
        %v1214 = vpack.c.bf16 %v1183, %v1182
        %v1215 = vpack.c.bf16 %v1185, %v1184
        %v1216 = vpack.c.bf16 %v1187, %v1186
        %v1217 = vpack.c.bf16 %v1189, %v1188
        %v1218 = vpack.c.bf16 %v1191, %v1190
        %v1219 = vpack.c.bf16 %v1193, %v1192
        %v1220 = vpack.c.bf16 %v1195, %v1194
        %v1221 = vpack.c.bf16 %v1197, %v1196
        %v1222 = vpack.c.bf16 %v1199, %v1198
        %v1223 = vpack.c.bf16 %v1201, %v1200
        %v1224 = vpack.c.bf16 %v1203, %v1202
        %v1225 = vpack.c.bf16 %v1205, %v1204
        %v1226 = vpack.c.bf16 %v1207, %v1206
        %v1227 = vpack.c.bf16 %v1209, %v1208
        %v1228 = vpack.c.bf16 %v1211, %v1210
        %v1229 = vpack.c.bf16 %v1213, %v1212
        %v1246 = vunpack.c.l.b16 %v1214
        %v1247 = vunpack.c.h.b16 %v1214
        %v1248 = vunpack.c.l.b16 %v1215
        %v1249 = vunpack.c.h.b16 %v1215
        %v1250 = vunpack.c.l.b16 %v1216
        %v1251 = vunpack.c.h.b16 %v1216
        %v1252 = vunpack.c.l.b16 %v1217
        %v1253 = vunpack.c.h.b16 %v1217
        %v1254 = vunpack.c.l.b16 %v1218
        %v1255 = vunpack.c.h.b16 %v1218
        %v1256 = vunpack.c.l.b16 %v1219
        %v1257 = vunpack.c.h.b16 %v1219
        %v1258 = vunpack.c.l.b16 %v1220
        %v1259 = vunpack.c.h.b16 %v1220
        %v1260 = vunpack.c.l.b16 %v1221
        %v1261 = vunpack.c.h.b16 %v1221
        %v1262 = vunpack.c.l.b16 %v1222
        %v1263 = vunpack.c.h.b16 %v1222
        %v1264 = vunpack.c.l.b16 %v1223
        %v1265 = vunpack.c.h.b16 %v1223
        %v1266 = vunpack.c.l.b16 %v1224
        %v1267 = vunpack.c.h.b16 %v1224
        %v1268 = vunpack.c.l.b16 %v1225
        %v1269 = vunpack.c.h.b16 %v1225
        %v1270 = vunpack.c.l.b16 %v1226
        %v1271 = vunpack.c.h.b16 %v1226
        %v1272 = vunpack.c.l.b16 %v1227
        %v1273 = vunpack.c.h.b16 %v1227
        %v1274 = vunpack.c.l.b16 %v1228
        %v1275 = vunpack.c.h.b16 %v1228
        %v1276 = vunpack.c.l.b16 %v1229
        %v1277 = vunpack.c.h.b16 %v1229
        %v1278 = vpack.c.b16 %v1246, %v1246
        %v1279 = vpack.c.b16 %v1247, %v1247
        %v1280 = vpack.c.b16 %v1248, %v1248
        %v1281 = vpack.c.b16 %v1249, %v1249
        %v1282 = vpack.c.b16 %v1250, %v1250
        %v1283 = vpack.c.b16 %v1251, %v1251
        %v1284 = vpack.c.b16 %v1252, %v1252
        %v1285 = vpack.c.b16 %v1253, %v1253
        %v1286 = vpack.c.b16 %v1254, %v1254
        %v1287 = vpack.c.b16 %v1255, %v1255
        %v1288 = vpack.c.b16 %v1256, %v1256
        %v1289 = vpack.c.b16 %v1257, %v1257
        %v1290 = vpack.c.b16 %v1258, %v1258
        %v1291 = vpack.c.b16 %v1259, %v1259
        %v1292 = vpack.c.b16 %v1260, %v1260
        %v1293 = vpack.c.b16 %v1261, %v1261
        %v1294 = vpack.c.b16 %v1262, %v1262
        %v1295 = vpack.c.b16 %v1263, %v1263
        %v1296 = vpack.c.b16 %v1264, %v1264
        %v1297 = vpack.c.b16 %v1265, %v1265
        %v1298 = vpack.c.b16 %v1266, %v1266
        %v1299 = vpack.c.b16 %v1267, %v1267
        %v1300 = vpack.c.b16 %v1268, %v1268
        %v1301 = vpack.c.b16 %v1269, %v1269
        %v1302 = vpack.c.b16 %v1270, %v1270
        %v1303 = vpack.c.b16 %v1271, %v1271
        %v1304 = vpack.c.b16 %v1272, %v1272
        %v1305 = vpack.c.b16 %v1273, %v1273
        %v1306 = vpack.c.b16 %v1274, %v1274
        %v1307 = vpack.c.b16 %v1275, %v1275
        %v1308 = vpack.c.b16 %v1276, %v1276
        %v1309 = vpack.c.b16 %v1277, %v1277
        %1342 = vst [vmem:[%s276] sm:$0xf] %v1278
        %1343 = vst [vmem:[%s276 + $0x4] sm:$0xf] %v1279
        %1344 = vst [vmem:[%s276 + $0x8] sm:$0xf] %v1280
        %1345 = vst [vmem:[%s276 + $0xc] sm:$0xf] %v1281
        %1346 = vst [vmem:[%s276 + $0x10] sm:$0xf] %v1282
        %1347 = vst [vmem:[%s276 + $0x14] sm:$0xf] %v1283
        %1348 = vst [vmem:[%s276 + $0x18] sm:$0xf] %v1284
        %1349 = vst [vmem:[%s276 + $0x1c] sm:$0xf] %v1285
        %1350 = vst [vmem:[%s276 + $0x20] sm:$0xf] %v1286
        %1351 = vst [vmem:[%s276 + $0x24] sm:$0xf] %v1287
        %1352 = vst [vmem:[%s276 + $0x28] sm:$0xf] %v1288
        %1353 = vst [vmem:[%s276 + $0x2c] sm:$0xf] %v1289
        %1354 = vst [vmem:[%s276 + $0x30] sm:$0xf] %v1290
        %1355 = vst [vmem:[%s276 + $0x34] sm:$0xf] %v1291
        %1356 = vst [vmem:[%s276 + $0x38] sm:$0xf] %v1292
        %1357 = vst [vmem:[%s276 + $0x3c] sm:$0xf] %v1293
        %1358 = vst [vmem:[%s276 + $0x40] sm:$0xf] %v1294
        %1359 = vst [vmem:[%s276 + $0x44] sm:$0xf] %v1295
        %1360 = vst [vmem:[%s276 + $0x48] sm:$0xf] %v1296
        %1361 = vst [vmem:[%s276 + $0x4c] sm:$0xf] %v1297
        %1362 = vst [vmem:[%s276 + $0x50] sm:$0xf] %v1298
        %1363 = vst [vmem:[%s276 + $0x54] sm:$0xf] %v1299
        %1364 = vst [vmem:[%s276 + $0x58] sm:$0xf] %v1300
        %1365 = vst [vmem:[%s276 + $0x5c] sm:$0xf] %v1301
        %1366 = vst [vmem:[%s276 + $0x60] sm:$0xf] %v1302
        %1367 = vst [vmem:[%s276 + $0x64] sm:$0xf] %v1303
        %1368 = vst [vmem:[%s276 + $0x68] sm:$0xf] %v1304
        %1369 = vst [vmem:[%s276 + $0x6c] sm:$0xf] %v1305
        %1370 = vst [vmem:[%s276 + $0x70] sm:$0xf] %v1306
        %1371 = vst [vmem:[%s276 + $0x74] sm:$0xf] %v1307
        %1372 = vst [vmem:[%s276 + $0x78] sm:$0xf] %v1308
        %1373 = vst [vmem:[%s276 + $0x7c] sm:$0xf] %v1309
        %v1374 = vld [vmem:[%s3] sm:$0xf]
        %1375 = vmatprep.subr.bf16.mxu0 0
        %1376 = vmatpush1.bf16.xpose.msra.mxu0 %v1214
        %1377 = vmatprep.subr.bf16.mxu0 0
        %1378 = vmatpush1.bf16.xpose.msra.mxu0 %v1215
        %1379 = vmatprep.subr.bf16.mxu0 0
        %1380 = vmatpush1.bf16.xpose.msra.mxu0 %v1216
        %1381 = vmatprep.subr.bf16.mxu0 0
        %1382 = vmatpush1.bf16.xpose.msra.mxu0 %v1217
        %1383 = vmatprep.subr.bf16.mxu0 0
        %1384 = vmatpush1.bf16.xpose.msra.mxu0 %v1218
        %1385 = vmatprep.subr.bf16.mxu0 0
        %1386 = vmatpush1.bf16.xpose.msra.mxu0 %v1219
        %1387 = vmatprep.subr.bf16.mxu0 0
        %1388 = vmatpush1.bf16.xpose.msra.mxu0 %v1220
        %1389 = vmatprep.subr.bf16.mxu0 0
        %1390 = vmatpush1.bf16.xpose.msra.mxu0 %v1221
        %1391 = vmatprep.subr.bf16.mxu0 0
        %1392 = vmatpush1.bf16.xpose.msra.mxu0 %v1222
        %1393 = vmatprep.subr.bf16.mxu0 0
        %1394 = vmatpush1.bf16.xpose.msra.mxu0 %v1223
        %1395 = vmatprep.subr.bf16.mxu0 0
        %1396 = vmatpush1.bf16.xpose.msra.mxu0 %v1224
        %1397 = vmatprep.subr.bf16.mxu0 0
        %1398 = vmatpush1.bf16.xpose.msra.mxu0 %v1225
        %1399 = vmatprep.subr.bf16.mxu0 0
        %1400 = vmatpush1.bf16.xpose.msra.mxu0 %v1226
        %1401 = vmatprep.subr.bf16.mxu0 0
        %1402 = vmatpush1.bf16.xpose.msra.mxu0 %v1227
        %1403 = vmatprep.subr.bf16.mxu0 0
        %1404 = vmatpush1.bf16.xpose.msra.mxu0 %v1228
        %1405 = vmatprep.subr.bf16.mxu0 0
        %1406 = vmatpush1.bf16.xpose.msra.mxu0 %v1229
        %1407 = vmatprep.mubr.bf16.mxu0 0
        %1408 = vmatmul.mubr.bf16.gmra.mrb[0].mxu0 %v1374
        %v1409 = vpop.f32.mrb[0].mxu0
        %v1410 = vadd.f32 0.0, %v1409
        %v1411 = vpop.f32.mrb[0].mxu0
        %v1412 = vadd.f32 0.0, %v1411
        %v1413 = vpop.f32.mrb[0].mxu0
        %v1414 = vpop.f32.mrb[0].mxu0
        %1415 = vdwg.mxu0
        %v1418 = vcombine.low %v1410, %v1412
        %1420 = vst [vmem:[%s283] sm:$0xff] %v1418
        %v1421 = vld [vmem:[%s4] sm:$0xf]
        %v1422 = vld [vmem:[%s4 + $0x4] sm:$0xf]
        %v1423 = vld [vmem:[%s4 + $0x8] sm:$0xf]
        %v1424 = vld [vmem:[%s4 + $0xc] sm:$0xf]
        %v1425 = vld [vmem:[%s4 + $0x10] sm:$0xf]
        %v1426 = vld [vmem:[%s4 + $0x14] sm:$0xf]
        %v1427 = vld [vmem:[%s4 + $0x18] sm:$0xf]
        %v1428 = vld [vmem:[%s4 + $0x1c] sm:$0xf]
        %v1429 = vld [vmem:[%s4 + $0x20] sm:$0xf]
        %v1430 = vld [vmem:[%s4 + $0x24] sm:$0xf]
        %v1431 = vld [vmem:[%s4 + $0x28] sm:$0xf]
        %v1432 = vld [vmem:[%s4 + $0x2c] sm:$0xf]
        %v1433 = vld [vmem:[%s4 + $0x30] sm:$0xf]
        %v1434 = vld [vmem:[%s4 + $0x34] sm:$0xf]
        %v1435 = vld [vmem:[%s4 + $0x38] sm:$0xf]
        %v1436 = vld [vmem:[%s4 + $0x3c] sm:$0xf]
        %v1453 = vunpack.c.l.b16 %v1421
        %v1454 = vunpack.c.l.b16 %v1422
        %v1455 = vunpack.c.l.b16 %v1423
        %v1456 = vunpack.c.l.b16 %v1424
        %v1457 = vunpack.c.l.b16 %v1425
        %v1458 = vunpack.c.l.b16 %v1426
        %v1459 = vunpack.c.l.b16 %v1427
        %v1460 = vunpack.c.l.b16 %v1428
        %v1461 = vunpack.c.l.b16 %v1429
        %v1462 = vunpack.c.l.b16 %v1430
        %v1463 = vunpack.c.l.b16 %v1431
        %v1464 = vunpack.c.l.b16 %v1432
        %v1465 = vunpack.c.l.b16 %v1433
        %v1466 = vunpack.c.l.b16 %v1434
        %v1467 = vunpack.c.l.b16 %v1435
        %v1468 = vunpack.c.l.b16 %v1436
        %v1469 = vpack.c.b16 %v1454, %v1453
        %v1470 = vpack.c.b16 %v1456, %v1455
        %v1471 = vpack.c.b16 %v1458, %v1457
        %v1472 = vpack.c.b16 %v1460, %v1459
        %v1473 = vpack.c.b16 %v1462, %v1461
        %v1474 = vpack.c.b16 %v1464, %v1463
        %v1475 = vpack.c.b16 %v1466, %v1465
        %v1476 = vpack.c.b16 %v1468, %v1467
        %1485 = vmatprep.subr.bf16.mxu0 0
        %1486 = vmatpush1.bf16.msra.mxu0 %v1469
        %1487 = vmatprep.subr.bf16.mxu0 0
        %1488 = vmatpush1.bf16.msra.mxu0 %v1470
        %1489 = vmatprep.subr.bf16.mxu0 0
        %1490 = vmatpush1.bf16.msra.mxu0 %v1471
        %1491 = vmatprep.subr.bf16.mxu0 0
        %1492 = vmatpush1.bf16.msra.mxu0 %v1472
        %1493 = vmatprep.subr.bf16.mxu0 0
        %1494 = vmatpush1.bf16.msra.mxu0 %v1473
        %1495 = vmatprep.subr.bf16.mxu0 0
        %1496 = vmatpush1.bf16.msra.mxu0 %v1474
        %1497 = vmatprep.subr.bf16.mxu0 0
        %1498 = vmatpush1.bf16.msra.mxu0 %v1475
        %1499 = vmatprep.subr.bf16.mxu0 0
        %1500 = vmatpush1.bf16.msra.mxu0 %v1476
        %1501 = vmatprep.subr.bf16.mxu0 0
        %1502 = vmatpush1.bf16.msra.mxu0 0
        %1503 = vmatprep.subr.bf16.mxu0 0
        %1504 = vmatpush1.bf16.msra.mxu0 0
        %1505 = vmatprep.subr.bf16.mxu0 0
        %1506 = vmatpush1.bf16.msra.mxu0 0
        %1507 = vmatprep.subr.bf16.mxu0 0
        %1508 = vmatpush1.bf16.msra.mxu0 0
        %1509 = vmatprep.subr.bf16.mxu0 0
        %1510 = vmatpush1.bf16.msra.mxu0 0
        %1511 = vmatprep.subr.bf16.mxu0 0
        %1512 = vmatpush1.bf16.msra.mxu0 0
        %1513 = vmatprep.subr.bf16.mxu0 0
        %1514 = vmatpush1.bf16.msra.mxu0 0
        %1515 = vmatprep.subr.bf16.mxu0 0
        %1516 = vmatpush1.bf16.msra.mxu0 0
        %1517 = vmatprep.mubr.bf16.mxu0 0
        %1518 = vmatmul.mubr.bf16.gmra.mrb[0].mxu0 %v1214
        %v1519 = vpop.f32.mrb[0].mxu0
        %v1520 = vadd.f32 0.0, %v1519
        %v1521 = vpop.f32.mrb[0].mxu0
        %v1522 = vpop.f32.mrb[0].mxu0
        %v1523 = vadd.f32 0.0, %v1522
        %v1524 = vpop.f32.mrb[0].mxu0
        %1525 = vmatprep.mubr.bf16.mxu0 0
        %1526 = vmatmul.mubr.bf16.gmra.mrb[0].mxu0 %v1215
        %v1527 = vpop.f32.mrb[0].mxu0
        %v1528 = vadd.f32 0.0, %v1527
        %v1529 = vpop.f32.mrb[0].mxu0
        %v1530 = vpop.f32.mrb[0].mxu0
        %v1531 = vadd.f32 0.0, %v1530
        %v1532 = vpop.f32.mrb[0].mxu0
        %1533 = vmatprep.mubr.bf16.mxu0 0
        %1534 = vmatmul.mubr.bf16.gmra.mrb[0].mxu0 %v1216
        %v1535 = vpop.f32.mrb[0].mxu0
        %v1536 = vadd.f32 0.0, %v1535
        %v1537 = vpop.f32.mrb[0].mxu0
        %v1538 = vpop.f32.mrb[0].mxu0
        %v1539 = vadd.f32 0.0, %v1538
        %v1540 = vpop.f32.mrb[0].mxu0
        %1541 = vmatprep.mubr.bf16.mxu0 0
        %1542 = vmatmul.mubr.bf16.gmra.mrb[0].mxu0 %v1217
        %v1543 = vpop.f32.mrb[0].mxu0
        %v1544 = vadd.f32 0.0, %v1543
        %v1545 = vpop.f32.mrb[0].mxu0
        %v1546 = vpop.f32.mrb[0].mxu0
        %v1547 = vadd.f32 0.0, %v1546
        %v1548 = vpop.f32.mrb[0].mxu0
        %1549 = vmatprep.mubr.bf16.mxu0 0
        %1550 = vmatmul.mubr.bf16.gmra.mrb[0].mxu0 %v1218
        %v1551 = vpop.f32.mrb[0].mxu0
        %v1552 = vadd.f32 0.0, %v1551
        %v1553 = vpop.f32.mrb[0].mxu0
        %v1554 = vpop.f32.mrb[0].mxu0
        %v1555 = vadd.f32 0.0, %v1554
        %v1556 = vpop.f32.mrb[0].mxu0
        %1557 = vmatprep.mubr.bf16.mxu0 0
        %1558 = vmatmul.mubr.bf16.gmra.mrb[0].mxu0 %v1219
        %v1559 = vpop.f32.mrb[0].mxu0
        %v1560 = vadd.f32 0.0, %v1559
        %v1561 = vpop.f32.mrb[0].mxu0
        %v1562 = vpop.f32.mrb[0].mxu0
        %v1563 = vadd.f32 0.0, %v1562
        %v1564 = vpop.f32.mrb[0].mxu0
        %1565 = vmatprep.mubr.bf16.mxu0 0
        %1566 = vmatmul.mubr.bf16.gmra.mrb[0].mxu0 %v1220
        %v1567 = vpop.f32.mrb[0].mxu0
        %v1568 = vadd.f32 0.0, %v1567
        %v1569 = vpop.f32.mrb[0].mxu0
        %v1570 = vpop.f32.mrb[0].mxu0
        %v1571 = vadd.f32 0.0, %v1570
        %v1572 = vpop.f32.mrb[0].mxu0
        %1573 = vmatprep.mubr.bf16.mxu0 0
        %1574 = vmatmul.mubr.bf16.gmra.mrb[0].mxu0 %v1221
        %v1575 = vpop.f32.mrb[0].mxu0
        %v1576 = vadd.f32 0.0, %v1575
        %v1577 = vpop.f32.mrb[0].mxu0
        %v1578 = vpop.f32.mrb[0].mxu0
        %v1579 = vadd.f32 0.0, %v1578
        %v1580 = vpop.f32.mrb[0].mxu0
        %1581 = vmatprep.mubr.bf16.mxu0 0
        %1582 = vmatmul.mubr.bf16.gmra.mrb[0].mxu0 %v1222
        %v1583 = vpop.f32.mrb[0].mxu0
        %v1584 = vadd.f32 0.0, %v1583
        %v1585 = vpop.f32.mrb[0].mxu0
        %v1586 = vpop.f32.mrb[0].mxu0
        %v1587 = vadd.f32 0.0, %v1586
        %v1588 = vpop.f32.mrb[0].mxu0
        %1589 = vmatprep.mubr.bf16.mxu0 0
        %1590 = vmatmul.mubr.bf16.gmra.mrb[0].mxu0 %v1223
        %v1591 = vpop.f32.mrb[0].mxu0
        %v1592 = vadd.f32 0.0, %v1591
        %v1593 = vpop.f32.mrb[0].mxu0
        %v1594 = vpop.f32.mrb[0].mxu0
        %v1595 = vadd.f32 0.0, %v1594
        %v1596 = vpop.f32.mrb[0].mxu0
        %1597 = vmatprep.mubr.bf16.mxu0 0
        %1598 = vmatmul.mubr.bf16.gmra.mrb[0].mxu0 %v1224
        %v1599 = vpop.f32.mrb[0].mxu0
        %v1600 = vadd.f32 0.0, %v1599
        %v1601 = vpop.f32.mrb[0].mxu0
        %v1602 = vpop.f32.mrb[0].mxu0
        %v1603 = vadd.f32 0.0, %v1602
        %v1604 = vpop.f32.mrb[0].mxu0
        %1605 = vmatprep.mubr.bf16.mxu0 0
        %1606 = vmatmul.mubr.bf16.gmra.mrb[0].mxu0 %v1225
        %v1607 = vpop.f32.mrb[0].mxu0
        %v1608 = vadd.f32 0.0, %v1607
        %v1609 = vpop.f32.mrb[0].mxu0
        %v1610 = vpop.f32.mrb[0].mxu0
        %v1611 = vadd.f32 0.0, %v1610
        %v1612 = vpop.f32.mrb[0].mxu0
        %1613 = vmatprep.mubr.bf16.mxu0 0
        %1614 = vmatmul.mubr.bf16.gmra.mrb[0].mxu0 %v1226
        %v1615 = vpop.f32.mrb[0].mxu0
        %v1616 = vadd.f32 0.0, %v1615
        %v1617 = vpop.f32.mrb[0].mxu0
        %v1618 = vpop.f32.mrb[0].mxu0
        %v1619 = vadd.f32 0.0, %v1618
        %v1620 = vpop.f32.mrb[0].mxu0
        %1621 = vmatprep.mubr.bf16.mxu0 0
        %1622 = vmatmul.mubr.bf16.gmra.mrb[0].mxu0 %v1227
        %v1623 = vpop.f32.mrb[0].mxu0
        %v1624 = vadd.f32 0.0, %v1623
        %v1625 = vpop.f32.mrb[0].mxu0
        %v1626 = vpop.f32.mrb[0].mxu0
        %v1627 = vadd.f32 0.0, %v1626
        %v1628 = vpop.f32.mrb[0].mxu0
        %1629 = vmatprep.mubr.bf16.mxu0 0
        %1630 = vmatmul.mubr.bf16.gmra.mrb[0].mxu0 %v1228
        %v1631 = vpop.f32.mrb[0].mxu0
        %v1632 = vadd.f32 0.0, %v1631
        %v1633 = vpop.f32.mrb[0].mxu0
        %v1634 = vpop.f32.mrb[0].mxu0
        %v1635 = vadd.f32 0.0, %v1634
        %v1636 = vpop.f32.mrb[0].mxu0
        %1637 = vmatprep.mubr.bf16.mxu0 0
        %1638 = vmatmul.mubr.bf16.gmra.mrb[0].mxu0 %v1229
        %v1639 = vpop.f32.mrb[0].mxu0
        %v1640 = vadd.f32 0.0, %v1639
        %v1641 = vpop.f32.mrb[0].mxu0
        %v1642 = vpop.f32.mrb[0].mxu0
        %v1643 = vadd.f32 0.0, %v1642
        %v1644 = vpop.f32.mrb[0].mxu0
        %1645 = vdwg.mxu0
        %vm1646 = vcmask 31744
        %1647 = vst.msk [vmem:[%s303] sm:$0xff] %vm1646, %v1520
        %1648 = vst.msk [vmem:[%s303 + $0x8] sm:$0xff] %vm1646, %v1523
        %1649 = vst.msk [vmem:[%s303 + $0x10] sm:$0xff] %vm1646, %v1528
        %1650 = vst.msk [vmem:[%s303 + $0x18] sm:$0xff] %vm1646, %v1531
        %1651 = vst.msk [vmem:[%s303 + $0x20] sm:$0xff] %vm1646, %v1536
        %1652 = vst.msk [vmem:[%s303 + $0x28] sm:$0xff] %vm1646, %v1539
        %1653 = vst.msk [vmem:[%s303 + $0x30] sm:$0xff] %vm1646, %v1544
        %1654 = vst.msk [vmem:[%s303 + $0x38] sm:$0xff] %vm1646, %v1547
        %1655 = vst.msk [vmem:[%s303 + $0x40] sm:$0xff] %vm1646, %v1552
        %1656 = vst.msk [vmem:[%s303 + $0x48] sm:$0xff] %vm1646, %v1555
        %1657 = vst.msk [vmem:[%s303 + $0x50] sm:$0xff] %vm1646, %v1560
        %1658 = vst.msk [vmem:[%s303 + $0x58] sm:$0xff] %vm1646, %v1563
        %1659 = vst.msk [vmem:[%s303 + $0x60] sm:$0xff] %vm1646, %v1568
        %1660 = vst.msk [vmem:[%s303 + $0x68] sm:$0xff] %vm1646, %v1571
        %1661 = vst.msk [vmem:[%s303 + $0x70] sm:$0xff] %vm1646, %v1576
        %1662 = vst.msk [vmem:[%s303 + $0x78] sm:$0xff] %vm1646, %v1579
        %1663 = vst.msk [vmem:[%s303 + $0x80] sm:$0xff] %vm1646, %v1584
        %1664 = vst.msk [vmem:[%s303 + $0x88] sm:$0xff] %vm1646, %v1587
        %1665 = vst.msk [vmem:[%s303 + $0x90] sm:$0xff] %vm1646, %v1592
        %1666 = vst.msk [vmem:[%s303 + $0x98] sm:$0xff] %vm1646, %v1595
        %1667 = vst.msk [vmem:[%s303 + $0xa0] sm:$0xff] %vm1646, %v1600
        %1668 = vst.msk [vmem:[%s303 + $0xa8] sm:$0xff] %vm1646, %v1603
        %1669 = vst.msk [vmem:[%s303 + $0xb0] sm:$0xff] %vm1646, %v1608
        %1670 = vst.msk [vmem:[%s303 + $0xb8] sm:$0xff] %vm1646, %v1611
        %1671 = vst.msk [vmem:[%s303 + $0xc0] sm:$0xff] %vm1646, %v1616
        %1672 = vst.msk [vmem:[%s303 + $0xc8] sm:$0xff] %vm1646, %v1619
        %1673 = vst.msk [vmem:[%s303 + $0xd0] sm:$0xff] %vm1646, %v1624
        %1674 = vst.msk [vmem:[%s303 + $0xd8] sm:$0xff] %vm1646, %v1627
        %1675 = vst.msk [vmem:[%s303 + $0xe0] sm:$0xff] %vm1646, %v1632
        %1676 = vst.msk [vmem:[%s303 + $0xe8] sm:$0xff] %vm1646, %v1635
        %1677 = vst.msk [vmem:[%s303 + $0xf0] sm:$0xff] %vm1646, %v1640
        %1678 = vst.msk [vmem:[%s303 + $0xf8] sm:$0xff] %vm1646, %v1643
        %s1679 = sand.u32 %s143, 1
        %s1680 = scalar_lea.sflag [#allocation3], %s1679
        %s1681 = sand.u32 %s143, 1
        %s1682 = smul.addr %s1681, 128
        %s1683 = scalar_lea.vmem [#allocation2], %s1682
        %s1684 = sand.u32 %s169, 1
        %s1685 = scalar_lea.sflag [#allocation5], %s1684
        %s1686 = sand.u32 %s169, 1
        %s1687 = smul.addr %s1686, 8
        %s1688 = scalar_lea.vmem [#allocation4], %s1687
        %s1689 = smul.u32 32, %s25
        %p1690 = scmp.lt.s32.totalorder %s1689, 63
        %s1691 = scalar_select %p1690, %s1689, 63
        %s1692 = smul.addr %s1691, 8
        %s1693 = scalar_lea.vmem %s7, %s1692
        // Predicated region
        $region41: #{tpu_custom_call.1} parent=39 // pred_check
          %p1694 = pneg %p153
        $region42: #{tpu_custom_call.1} parent=39 // pred_check_branch
          %1696 = sbr.rel (%p1694) target = $region44
        $region43: #{tpu_custom_call.1} parent=39 // pred_region
          %s1697 = smul.u32 32, %s25
          %s1699 = ssub.s32 2048, 2048
          %1700 = vsyncadd %s1680, %s1699
          %s1701 = smul.addr %s1697, 64
          %s1702 = scalar_lea.hbm %s5, %s1701
          %s1703 = sshll.u32 %s1683, 4
          %s1704 = int_to_ptr.vmem [resolvable:$true] %s1703
          %1709 = dma.vmem_to_hbm [thread:$0]  %s1704, 2048, %s1702, %s1680, 64, 64, 4
        $region44: #{tpu_custom_call.1} parent=39 // pred_fallthru
          _
        // Predicated region
        $region45: #{tpu_custom_call.1} parent=39 // pred_check
          %p1710 = pneg %p179
        $region46: #{tpu_custom_call.1} parent=39 // pred_check_branch
          %1712 = sbr.rel (%p1710) target = $region48
        $region47: #{tpu_custom_call.1} parent=39 // pred_region
          %s1713 = smul.u32 2, %s25
          %s1715 = ssub.s32 128, 128
          %1716 = vsyncadd %s1685, %s1715
          %s1717 = smul.addr %s1713, 64
          %s1718 = scalar_lea.hbm %s6, %s1717
          %s1720 = sshll.u32 %s1688, 4
          %s1721 = int_to_ptr.vmem [resolvable:$true] %s1720
          %1723 = dma.vmem_to_hbm [thread:$0]  %s1721, 128, %s1718, %s1685
        $region48: #{tpu_custom_call.1} parent=39 // pred_fallthru
          _
        // Predicated region
        $region49: #{tpu_custom_call.1} parent=39 // pred_check
          %p1724 = pneg %p205
        $region50: #{tpu_custom_call.1} parent=39 // pred_check_branch
          %1726 = sbr.rel (%p1724) target = $region52
        $region51: #{tpu_custom_call.1} parent=39 // pred_region
          %s1727 = smul.u32 32, %s25
        $region52: #{tpu_custom_call.1} parent=39 // pred_fallthru
          _
      $region40: #{tpu_custom_call.1} parent=5 // pred_fallthru
        _
      %p1728 = scmp.le.s32.totalorder 2, %s20
      // Predicated region
      $region53: #{tpu_custom_call.1} parent=5 // pred_check
        %p1729 = pneg %p1728
      $region54: #{tpu_custom_call.1} parent=5 // pred_check_branch
        %1731 = sbr.rel (%p1729) target = $region56
      $region55: #{tpu_custom_call.1} parent=5 // pred_region
        %s1732 = ssub.s32 %s20, 2
        // Predicated region
        $region57: #{tpu_custom_call.1} parent=55 // pred_check
          %p1733 = pneg %p159
        $region58: #{tpu_custom_call.1} parent=55 // pred_check_branch
          %1735 = sbr.rel (%p1733) target = $region60
        $region59: #{tpu_custom_call.1} parent=55 // pred_region
          %s1736 = sand.u32 %s144, 1
          %s1737 = scalar_lea.sflag [#allocation3], %s1736
          %s1738 = sand.u32 %s144, 1
          %s1739 = smul.addr %s1738, 128
          %s1740 = scalar_lea.vmem [#allocation2], %s1739
          %1741 = dma.done %s1737, 2048
        $region60: #{tpu_custom_call.1} parent=55 // pred_fallthru
          _
        // Predicated region
        $region61: #{tpu_custom_call.1} parent=55 // pred_check
          %p1742 = pneg %p185
        $region62: #{tpu_custom_call.1} parent=55 // pred_check_branch
          %1744 = sbr.rel (%p1742) target = $region64
        $region63: #{tpu_custom_call.1} parent=55 // pred_region
          %s1745 = sand.u32 %s170, 1
          %s1746 = scalar_lea.sflag [#allocation5], %s1745
          %s1747 = sand.u32 %s170, 1
          %s1748 = smul.addr %s1747, 8
          %s1749 = scalar_lea.vmem [#allocation4], %s1748
          %1750 = dma.done %s1746, 128
        $region64: #{tpu_custom_call.1} parent=55 // pred_fallthru
          _
        // Predicated region
        $region65: #{tpu_custom_call.1} parent=55 // pred_check
          %p1751 = pneg %p211
        $region66: #{tpu_custom_call.1} parent=55 // pred_check_branch
          %1753 = sbr.rel (%p1751) target = $region68
        $region67: #{tpu_custom_call.1} parent=55 // pred_region
          %s1754 = smul.u32 32, %s26
          %p1755 = scmp.lt.s32.totalorder %s1754, 63
          %s1756 = scalar_select %p1755, %s1754, 63
          %s1757 = smul.addr %s1756, 8
          %s1758 = scalar_lea.vmem %s7, %s1757
        $region68: #{tpu_custom_call.1} parent=55 // pred_fallthru
          _
      $region56: #{tpu_custom_call.1} parent=5 // pred_fallthru
        _
    $region6: #{tpu_custom_call.1} parent=1 // loop_footer
      %s24 = sadd.s32 1, %s20
    $region7: #{tpu_custom_call.1} parent=1 // loop_footer_branch
      %19 = sbr.rel target = $region3
    $region8: #{tpu_custom_call.1} parent=1 // loop_exit
      _
    %1759 = vsyncpa [#allocation3], 1
    %s1760 = scalar_lea.sflag [#allocation3], 1
    %1761 = vsyncpa %s1760, 1
    %1762 = vsyncpa [#allocation5], 1
    %s1763 = scalar_lea.sflag [#allocation5], 1
    %1764 = vsyncpa %s1763, 1

</llo_original>
